<compile_context>
chip_gen: v7x
topology: tpu7x:2x2x1
jax: 0.10.0
libtpu: 0.0.40
codegen_flags: <defaults>
</compile_context>

<pallas_src>
import jax
import jax.numpy as jnp
from jax import lax
from jax.experimental import pallas as pl
from jax.experimental.pallas import tpu as pltpu


# ----------------------------------------------------------------------------
# Fused forward kernel: one grid step == one sequence of the batch.
# ----------------------------------------------------------------------------
def _fused_forward_kernel(
    lens_ref,      # SMEM (bs,) int32            [scalar prefetch]
    patches_ref,   # VMEM (C*9, T, P)            im2col patches of this sequence
    wconv_ref,     # SMEM (C*9, OC) f32          conv weights (scalar reads)
    bconv_ref,     # SMEM (OC,)    f32           conv bias
    wfold_ref,     # VMEM (OC, P, 4E)            W_embed @ W_ih, per conv channel
    bfold_ref,     # VMEM (1, 4E)                b_embed @ W_ih + b_ih + b_hh
    whh_ref,       # VMEM (E, 4E)                LSTM recurrent weights
    wp1_ref,       # VMEM (E, 2E)
    bp1_ref,       # VMEM (1, 2E)
    wp2_ref,       # VMEM (2E, Dout)
    bp2_ref,       # VMEM (1, Dout)
    out_ref,       # VMEM (1, Dout)              output block for this sequence
    xg_ref,        # VMEM scratch (T, 4E)        gate pre-activations (input path)
):
    b = pl.program_id(0)
    C9, T, P = patches_ref.shape
    OC = wfold_ref.shape[0]
    four_e = wfold_ref.shape[2]
    E = whh_ref.shape[0]

    # ---- Stage 1: conv(3x3, pad=1) + ReLU + folded (embed @ W_ih) projection.
    # The LSTM input projection is hoisted out of the recurrent loop: all T
    # gate pre-activations are produced here with OC GEMMs of (T,P)x(P,4E).
    gates_x = jnp.zeros((T, four_e), dtype=jnp.float32) + bfold_ref[...]
    for oc in range(OC):
        acc = jnp.zeros((T, P), dtype=jnp.float32) + bconv_ref[oc]
        for k in range(C9):
            acc = acc + wconv_ref[k, oc] * patches_ref[k]        # VPU MACs
        acc = jnp.maximum(acc, 0.0)      # ReLU (dropout = eval-mode identity)
        gates_x = gates_x + jnp.dot(acc, wfold_ref[oc],
                                    preferred_element_type=jnp.float32)
    xg_ref[...] = gates_x                # (T, 4E), lane-dense, stays in VMEM

    # ---- Stage 2: LSTM recurrence.  Only h @ W_hh remains per step.
    # Capture h at t == length-1 (pack_padded_sequence equivalence: with a
    # contiguous valid-prefix mask and length >= 1, h_t depends only on
    # inputs 0..t, so this equals the packed-sequence result).
    length = lens_ref[b]
    zeros_be = jnp.zeros((1, E), dtype=jnp.float32)

    def step(t, carry):
        h, c, h_last = carry
        gates = xg_ref[pl.ds(t, 1), :] + jnp.dot(
            h, whh_ref[...], preferred_element_type=jnp.float32)   # (1, 4E)
        i = jax.nn.sigmoid(gates[:, 0 * E:1 * E])
        f = jax.nn.sigmoid(gates[:, 1 * E:2 * E])
        g = jnp.tanh(gates[:, 2 * E:3 * E])
        o = jax.nn.sigmoid(gates[:, 3 * E:4 * E])
        c_new = f * c + i * g
        h_new = o * jnp.tanh(c_new)
        h_last = jnp.where(t == length - 1, h_new, h_last)
        return h_new, c_new, h_last

    _, _, h_last = lax.fori_loop(
        0, T, step, (zeros_be, zeros_be, zeros_be), unroll=True)

    # ---- Stage 3: post layers  Linear(E, 2E) -> tanh -> Linear(2E, Dout).
    hid = jnp.tanh(
        jnp.dot(h_last, wp1_ref[...], preferred_element_type=jnp.float32)
        + bp1_ref[...])
    y = (jnp.dot(hid, wp2_ref[...], preferred_element_type=jnp.float32)
         + bp2_ref[...])
    out_ref[...] = y.astype(out_ref.dtype)


# ----------------------------------------------------------------------------
# Full forward pass of ImageLSTMNetwork.
# x: (bs, set_size, C, H, W)   mask: (bs, set_size) of 0/1 (valid prefix).
# ----------------------------------------------------------------------------
def image_lstm_forward(x, mask, params):
    bs, T, C, H, W = x.shape
    P = H * W
    OC = params["w_conv"].shape[1]
    E = params["w_ih"].shape[0]
    four_e = 4 * E
    Dout = params["w_post2"].shape[1]

    # --- XLA-side prep (tiny): im2col patches in (C*9, bs, T, H*W) layout ----
    xp = jnp.pad(x, ((0, 0), (0, 0), (0, 0), (1, 1), (1, 1)))
    shifts = [xp[:, :, :, kh:kh + H, kw:kw + W]
              for kh in range(3) for kw in range(3)]      # each (bs,T,C,H,W)
    patches = jnp.stack(shifts, axis=0)                   # (9, bs, T, C, H, W)
    patches = patches.transpose(3, 0, 1, 2, 4, 5)         # (C, 9, bs, T, H, W)
    patches = patches.reshape(C * 9, bs, T, P)            # k = c*9 + kh*3 + kw

    # --- fold Linear(embed) into the LSTM input projection (no nonlinearity
    # between them).  In a real deployment fold once offline.
    w_fold = jnp.matmul(params["w_embed"].reshape(OC, P, E),
                        params["w_ih"])                   # (OC, P, 4E)
    b_fold = (params["b_embed"] @ params["w_ih"]
              + params["b_ih"] + params["b_hh"])          # (1, 4E)

    # valid-prefix lengths (must be >= 1, as with pack_padded_sequence).
    lengths = jnp.sum(mask, axis=1).astype(jnp.int32)     # (bs,)

    grid_spec = pltpu.PrefetchScalarGridSpec(
        num_scalar_prefetch=1,
        grid=(bs,),
        in_specs=[
            pl.BlockSpec((C * 9, None, T, P), lambda b, lens: (0, b, 0, 0)),
            pl.BlockSpec(memory_space=pltpu.MemorySpace.SMEM),   # w_conv
            pl.BlockSpec(memory_space=pltpu.MemorySpace.SMEM),   # b_conv
            pl.BlockSpec((OC, P, four_e), lambda b, lens: (0, 0, 0)),
            pl.BlockSpec((1, four_e), lambda b, lens: (0, 0)),
            pl.BlockSpec((E, four_e), lambda b, lens: (0, 0)),
            pl.BlockSpec((E, 2 * E), lambda b, lens: (0, 0)),
            pl.BlockSpec((1, 2 * E), lambda b, lens: (0, 0)),
            pl.BlockSpec((2 * E, Dout), lambda b, lens: (0, 0)),
            pl.BlockSpec((1, Dout), lambda b, lens: (0, 0)),
        ],
        out_specs=pl.BlockSpec((None, 1, Dout), lambda b, lens: (b, 0, 0)),
        scratch_shapes=[pltpu.VMEM((T, four_e), jnp.float32)],
    )

    out = pl.pallas_call(
        _fused_forward_kernel,
        out_shape=jax.ShapeDtypeStruct((bs, 1, Dout), jnp.float32),
        grid_spec=grid_spec,
        compiler_params=pltpu.CompilerParams(
            dimension_semantics=("parallel",)),
    )(lengths, patches,
      params["w_conv"], params["b_conv"],
      w_fold, b_fold, params["w_hh"],
      params["w_post1"], params["b_post1"],
      params["w_post2"], params["b_post2"])

    return out.reshape(bs, Dout)


# ----------------------------------------------------------------------------
# Deterministic parameter init (synthetic; shapes implied by the module).
# Gate order of w_ih/w_hh/b_ih/b_hh columns is PyTorch's (i, f, g, o).
# ----------------------------------------------------------------------------
def init_params(key, C, H, W, embed_features, output_dim, conv_channels=3):
    ks = jax.random.split(key, 12)
    E = embed_features
    s = 0.1
    return {
        "w_conv": s * jax.random.normal(ks[0], (C * 9, conv_channels), jnp.float32),
        "b_conv": s * jax.random.normal(ks[1], (conv_channels,), jnp.float32),
        "w_embed": s * jax.random.normal(ks[2], (conv_channels * H * W, E), jnp.float32),
        "b_embed": s * jax.random.normal(ks[3], (1, E), jnp.float32),
        "w_ih": s * jax.random.normal(ks[4], (E, 4 * E), jnp.float32),
        "w_hh": s * jax.random.normal(ks[5], (E, 4 * E), jnp.float32),
        "b_ih": s * jax.random.normal(ks[6], (1, 4 * E), jnp.float32),
        "b_hh": s * jax.random.normal(ks[7], (1, 4 * E), jnp.float32),
        "w_post1": s * jax.random.normal(ks[8], (E, 2 * E), jnp.float32),
        "b_post1": s * jax.random.normal(ks[9], (1, 2 * E), jnp.float32),
        "w_post2": s * jax.random.normal(ks[10], (2 * E, output_dim), jnp.float32),
        "b_post2": jnp.zeros((1, output_dim), jnp.float32),
    }


if __name__ == "__main__":
    bs, set_size = 2, 8
    C, H, W = 1, 16, 16          # entity_size
    embed_features = 32          # -> 4E = 128 (lane-dense gates)
    output_dim = 1

    key = jax.random.PRNGKey(0)
    k_x, k_p = jax.random.split(key)

    x = jax.random.normal(k_x, (bs, set_size, C, H, W), jnp.float32)
    lengths = jnp.array([set_size, 5], dtype=jnp.int32)  # valid prefixes (>= 1)
    mask = (jnp.arange(set_size)[None, :] < lengths[:, None]).astype(jnp.float32)

    params = init_params(k_p, C, H, W, embed_features, output_dim)

    fwd = jax.jit(image_lstm_forward)
    out = fwd(x, mask, params)
    out = jax.block_until_ready(out)
    assert out.shape == (bs, output_dim)
    print("KERNEL_OK")
</pallas_src>

<mosaic_0001>
module attributes {stable_mosaic.version = 11 : i64} {
  func.func @_fused_forward_kernel(%arg0: i32, %arg1: memref<2xi32, #tpu.memory_space<smem>>, %arg2: memref<9x1x8x256xf32, #tpu.memory_space<vmem>>, %arg3: memref<9x3xf32, #tpu.memory_space<smem>>, %arg4: memref<3xf32, #tpu.memory_space<smem>>, %arg5: memref<3x256x128xf32, #tpu.memory_space<vmem>>, %arg6: memref<1x128xf32, #tpu.memory_space<vmem>>, %arg7: memref<32x128xf32, #tpu.memory_space<vmem>>, %arg8: memref<32x64xf32, #tpu.memory_space<vmem>>, %arg9: memref<1x64xf32, #tpu.memory_space<vmem>>, %arg10: memref<64x1xf32, #tpu.memory_space<vmem>>, %arg11: memref<1x1xf32, #tpu.memory_space<vmem>>, %arg12: memref<1x1x1xf32, #tpu.memory_space<vmem>>, %arg13: memref<8x128xf32, #tpu.memory_space<vmem>>) attributes {dimension_semantics = [#tpu.dimension_semantics<parallel>], iteration_bounds = array<i64: 2>, scalar_prefetch = 1 : i64, scratch_operands = 1 : i64, tpu.core_type = #tpu.core_type<tc>, window_params = [{transform_indices = @transform_0, window_bounds = array<i64: 9, 1, 8, 256>}, {transform_indices = @transform_1, window_bounds = array<i64: 9, 3>}, {transform_indices = @transform_2, window_bounds = array<i64: 3>}, {pipeline_mode = #tpu.pipeline_mode<synchronous>, transform_indices = @transform_3, window_bounds = array<i64: 3, 256, 128>}, {pipeline_mode = #tpu.pipeline_mode<synchronous>, transform_indices = @transform_4, window_bounds = array<i64: 1, 128>}, {pipeline_mode = #tpu.pipeline_mode<synchronous>, transform_indices = @transform_5, window_bounds = array<i64: 32, 128>}, {pipeline_mode = #tpu.pipeline_mode<synchronous>, transform_indices = @transform_6, window_bounds = array<i64: 32, 64>}, {pipeline_mode = #tpu.pipeline_mode<synchronous>, transform_indices = @transform_7, window_bounds = array<i64: 1, 64>}, {pipeline_mode = #tpu.pipeline_mode<synchronous>, transform_indices = @transform_8, window_bounds = array<i64: 64, 1>}, {pipeline_mode = #tpu.pipeline_mode<synchronous>, transform_indices = @transform_9, window_bounds = array<i64: 1, 1>}, {transform_indices = @transform_10, window_bounds = array<i64: 1, 1, 1>}]} {
    %cst = arith.constant 0.000000e+00 : f32
    %0 = vector.broadcast %cst : f32 to vector<8x128xf32>
    %c0 = arith.constant 0 : index
    %c0_0 = arith.constant 0 : index
    %1 = vector.load %arg6[%c0, %c0_0] : memref<1x128xf32, #tpu.memory_space<vmem>>, vector<1x128xf32>
    %2 = vector.broadcast %1 : vector<1x128xf32> to vector<8x128xf32>
    %3 = arith.addf %0, %2 : vector<8x128xf32>
    %cst_1 = arith.constant 0.000000e+00 : f32
    %4 = vector.broadcast %cst_1 : f32 to vector<8x256xf32>
    %c0_2 = arith.constant 0 : index
    %5 = memref.load %arg4[%c0_2] : memref<3xf32, #tpu.memory_space<smem>>
    %6 = vector.broadcast %5 : f32 to vector<8x256xf32>
    %7 = arith.addf %4, %6 : vector<8x256xf32>
    %c0_3 = arith.constant 0 : index
    %c0_4 = arith.constant 0 : index
    %8 = memref.load %arg3[%c0_3, %c0_4] : memref<9x3xf32, #tpu.memory_space<smem>>
    %c0_5 = arith.constant 0 : index
    %c0_6 = arith.constant 0 : index
    %c0_7 = arith.constant 0 : index
    %c0_8 = arith.constant 0 : index
    %9 = vector.load %arg2[%c0_5, %c0_6, %c0_7, %c0_8] : memref<9x1x8x256xf32, #tpu.memory_space<vmem>>, vector<1x1x8x256xf32>
    %10 = vector.shape_cast %9 : vector<1x1x8x256xf32> to vector<8x256xf32>
    %11 = vector.broadcast %8 : f32 to vector<8x256xf32>
    %12 = arith.mulf %11, %10 : vector<8x256xf32>
    %13 = arith.addf %7, %12 : vector<8x256xf32>
    %c1 = arith.constant 1 : index
    %c0_9 = arith.constant 0 : index
    %14 = memref.load %arg3[%c1, %c0_9] : memref<9x3xf32, #tpu.memory_space<smem>>
    %c1_10 = arith.constant 1 : index
    %c0_11 = arith.constant 0 : index
    %c0_12 = arith.constant 0 : index
    %c0_13 = arith.constant 0 : index
    %15 = vector.load %arg2[%c1_10, %c0_11, %c0_12, %c0_13] : memref<9x1x8x256xf32, #tpu.memory_space<vmem>>, vector<1x1x8x256xf32>
    %16 = vector.shape_cast %15 : vector<1x1x8x256xf32> to vector<8x256xf32>
    %17 = vector.broadcast %14 : f32 to vector<8x256xf32>
    %18 = arith.mulf %17, %16 : vector<8x256xf32>
    %19 = arith.addf %13, %18 : vector<8x256xf32>
    %c2 = arith.constant 2 : index
    %c0_14 = arith.constant 0 : index
    %20 = memref.load %arg3[%c2, %c0_14] : memref<9x3xf32, #tpu.memory_space<smem>>
    %c2_15 = arith.constant 2 : index
    %c0_16 = arith.constant 0 : index
    %c0_17 = arith.constant 0 : index
    %c0_18 = arith.constant 0 : index
    %21 = vector.load %arg2[%c2_15, %c0_16, %c0_17, %c0_18] : memref<9x1x8x256xf32, #tpu.memory_space<vmem>>, vector<1x1x8x256xf32>
    %22 = vector.shape_cast %21 : vector<1x1x8x256xf32> to vector<8x256xf32>
    %23 = vector.broadcast %20 : f32 to vector<8x256xf32>
    %24 = arith.mulf %23, %22 : vector<8x256xf32>
    %25 = arith.addf %19, %24 : vector<8x256xf32>
    %c3 = arith.constant 3 : index
    %c0_19 = arith.constant 0 : index
    %26 = memref.load %arg3[%c3, %c0_19] : memref<9x3xf32, #tpu.memory_space<smem>>
    %c3_20 = arith.constant 3 : index
    %c0_21 = arith.constant 0 : index
    %c0_22 = arith.constant 0 : index
    %c0_23 = arith.constant 0 : index
    %27 = vector.load %arg2[%c3_20, %c0_21, %c0_22, %c0_23] : memref<9x1x8x256xf32, #tpu.memory_space<vmem>>, vector<1x1x8x256xf32>
    %28 = vector.shape_cast %27 : vector<1x1x8x256xf32> to vector<8x256xf32>
    %29 = vector.broadcast %26 : f32 to vector<8x256xf32>
    %30 = arith.mulf %29, %28 : vector<8x256xf32>
    %31 = arith.addf %25, %30 : vector<8x256xf32>
    %c4 = arith.constant 4 : index
    %c0_24 = arith.constant 0 : index
    %32 = memref.load %arg3[%c4, %c0_24] : memref<9x3xf32, #tpu.memory_space<smem>>
    %c4_25 = arith.constant 4 : index
    %c0_26 = arith.constant 0 : index
    %c0_27 = arith.constant 0 : index
    %c0_28 = arith.constant 0 : index
    %33 = vector.load %arg2[%c4_25, %c0_26, %c0_27, %c0_28] : memref<9x1x8x256xf32, #tpu.memory_space<vmem>>, vector<1x1x8x256xf32>
    %34 = vector.shape_cast %33 : vector<1x1x8x256xf32> to vector<8x256xf32>
    %35 = vector.broadcast %32 : f32 to vector<8x256xf32>
    %36 = arith.mulf %35, %34 : vector<8x256xf32>
    %37 = arith.addf %31, %36 : vector<8x256xf32>
    %c5 = arith.constant 5 : index
    %c0_29 = arith.constant 0 : index
    %38 = memref.load %arg3[%c5, %c0_29] : memref<9x3xf32, #tpu.memory_space<smem>>
    %c5_30 = arith.constant 5 : index
    %c0_31 = arith.constant 0 : index
    %c0_32 = arith.constant 0 : index
    %c0_33 = arith.constant 0 : index
    %39 = vector.load %arg2[%c5_30, %c0_31, %c0_32, %c0_33] : memref<9x1x8x256xf32, #tpu.memory_space<vmem>>, vector<1x1x8x256xf32>
    %40 = vector.shape_cast %39 : vector<1x1x8x256xf32> to vector<8x256xf32>
    %41 = vector.broadcast %38 : f32 to vector<8x256xf32>
    %42 = arith.mulf %41, %40 : vector<8x256xf32>
    %43 = arith.addf %37, %42 : vector<8x256xf32>
    %c6 = arith.constant 6 : index
    %c0_34 = arith.constant 0 : index
    %44 = memref.load %arg3[%c6, %c0_34] : memref<9x3xf32, #tpu.memory_space<smem>>
    %c6_35 = arith.constant 6 : index
    %c0_36 = arith.constant 0 : index
    %c0_37 = arith.constant 0 : index
    %c0_38 = arith.constant 0 : index
    %45 = vector.load %arg2[%c6_35, %c0_36, %c0_37, %c0_38] : memref<9x1x8x256xf32, #tpu.memory_space<vmem>>, vector<1x1x8x256xf32>
    %46 = vector.shape_cast %45 : vector<1x1x8x256xf32> to vector<8x256xf32>
    %47 = vector.broadcast %44 : f32 to vector<8x256xf32>
    %48 = arith.mulf %47, %46 : vector<8x256xf32>
    %49 = arith.addf %43, %48 : vector<8x256xf32>
    %c7 = arith.constant 7 : index
    %c0_39 = arith.constant 0 : index
    %50 = memref.load %arg3[%c7, %c0_39] : memref<9x3xf32, #tpu.memory_space<smem>>
    %c7_40 = arith.constant 7 : index
    %c0_41 = arith.constant 0 : index
    %c0_42 = arith.constant 0 : index
    %c0_43 = arith.constant 0 : index
    %51 = vector.load %arg2[%c7_40, %c0_41, %c0_42, %c0_43] : memref<9x1x8x256xf32, #tpu.memory_space<vmem>>, vector<1x1x8x256xf32>
    %52 = vector.shape_cast %51 : vector<1x1x8x256xf32> to vector<8x256xf32>
    %53 = vector.broadcast %50 : f32 to vector<8x256xf32>
    %54 = arith.mulf %53, %52 : vector<8x256xf32>
    %55 = arith.addf %49, %54 : vector<8x256xf32>
    %c8 = arith.constant 8 : index
    %c0_44 = arith.constant 0 : index
    %56 = memref.load %arg3[%c8, %c0_44] : memref<9x3xf32, #tpu.memory_space<smem>>
    %c8_45 = arith.constant 8 : index
    %c0_46 = arith.constant 0 : index
    %c0_47 = arith.constant 0 : index
    %c0_48 = arith.constant 0 : index
    %57 = vector.load %arg2[%c8_45, %c0_46, %c0_47, %c0_48] : memref<9x1x8x256xf32, #tpu.memory_space<vmem>>, vector<1x1x8x256xf32>
    %58 = vector.shape_cast %57 : vector<1x1x8x256xf32> to vector<8x256xf32>
    %59 = vector.broadcast %56 : f32 to vector<8x256xf32>
    %60 = arith.mulf %59, %58 : vector<8x256xf32>
    %61 = arith.addf %55, %60 : vector<8x256xf32>
    %cst_49 = arith.constant 0.000000e+00 : f32
    %62 = vector.broadcast %cst_49 : f32 to vector<8x256xf32>
    %63 = arith.maximumf %61, %62 : vector<8x256xf32>
    %c0_50 = arith.constant 0 : index
    %c0_51 = arith.constant 0 : index
    %c0_52 = arith.constant 0 : index
    %64 = vector.load %arg5[%c0_50, %c0_51, %c0_52] : memref<3x256x128xf32, #tpu.memory_space<vmem>>, vector<1x256x128xf32>
    %65 = vector.shape_cast %64 : vector<1x256x128xf32> to vector<256x128xf32>
    %cst_53 = arith.constant dense<0.000000e+00> : vector<8x128xf32>
    %66 = tpu.matmul %63, %65, %cst_53 {dimension_numbers = #tpu.dot_dimension_numbers<[1], [0], [0], [1], [0, 0, 1, 1], [], []>} : vector<8x256xf32>, vector<256x128xf32>, vector<8x128xf32> -> vector<8x128xf32>
    %67 = arith.addf %3, %66 : vector<8x128xf32>
    %cst_54 = arith.constant 0.000000e+00 : f32
    %68 = vector.broadcast %cst_54 : f32 to vector<8x256xf32>
    %c1_55 = arith.constant 1 : index
    %69 = memref.load %arg4[%c1_55] : memref<3xf32, #tpu.memory_space<smem>>
    %70 = vector.broadcast %69 : f32 to vector<8x256xf32>
    %71 = arith.addf %68, %70 : vector<8x256xf32>
    %c0_56 = arith.constant 0 : index
    %c1_57 = arith.constant 1 : index
    %72 = memref.load %arg3[%c0_56, %c1_57] : memref<9x3xf32, #tpu.memory_space<smem>>
    %c0_58 = arith.constant 0 : index
    %c0_59 = arith.constant 0 : index
    %c0_60 = arith.constant 0 : index
    %c0_61 = arith.constant 0 : index
    %73 = vector.load %arg2[%c0_58, %c0_59, %c0_60, %c0_61] : memref<9x1x8x256xf32, #tpu.memory_space<vmem>>, vector<1x1x8x256xf32>
    %74 = vector.shape_cast %73 : vector<1x1x8x256xf32> to vector<8x256xf32>
    %75 = vector.broadcast %72 : f32 to vector<8x256xf32>
    %76 = arith.mulf %75, %74 : vector<8x256xf32>
    %77 = arith.addf %71, %76 : vector<8x256xf32>
    %c1_62 = arith.constant 1 : index
    %c1_63 = arith.constant 1 : index
    %78 = memref.load %arg3[%c1_62, %c1_63] : memref<9x3xf32, #tpu.memory_space<smem>>
    %c1_64 = arith.constant 1 : index
    %c0_65 = arith.constant 0 : index
    %c0_66 = arith.constant 0 : index
    %c0_67 = arith.constant 0 : index
    %79 = vector.load %arg2[%c1_64, %c0_65, %c0_66, %c0_67] : memref<9x1x8x256xf32, #tpu.memory_space<vmem>>, vector<1x1x8x256xf32>
    %80 = vector.shape_cast %79 : vector<1x1x8x256xf32> to vector<8x256xf32>
    %81 = vector.broadcast %78 : f32 to vector<8x256xf32>
    %82 = arith.mulf %81, %80 : vector<8x256xf32>
    %83 = arith.addf %77, %82 : vector<8x256xf32>
    %c2_68 = arith.constant 2 : index
    %c1_69 = arith.constant 1 : index
    %84 = memref.load %arg3[%c2_68, %c1_69] : memref<9x3xf32, #tpu.memory_space<smem>>
    %c2_70 = arith.constant 2 : index
    %c0_71 = arith.constant 0 : index
    %c0_72 = arith.constant 0 : index
    %c0_73 = arith.constant 0 : index
    %85 = vector.load %arg2[%c2_70, %c0_71, %c0_72, %c0_73] : memref<9x1x8x256xf32, #tpu.memory_space<vmem>>, vector<1x1x8x256xf32>
    %86 = vector.shape_cast %85 : vector<1x1x8x256xf32> to vector<8x256xf32>
    %87 = vector.broadcast %84 : f32 to vector<8x256xf32>
    %88 = arith.mulf %87, %86 : vector<8x256xf32>
    %89 = arith.addf %83, %88 : vector<8x256xf32>
    %c3_74 = arith.constant 3 : index
    %c1_75 = arith.constant 1 : index
    %90 = memref.load %arg3[%c3_74, %c1_75] : memref<9x3xf32, #tpu.memory_space<smem>>
    %c3_76 = arith.constant 3 : index
    %c0_77 = arith.constant 0 : index
    %c0_78 = arith.constant 0 : index
    %c0_79 = arith.constant 0 : index
    %91 = vector.load %arg2[%c3_76, %c0_77, %c0_78, %c0_79] : memref<9x1x8x256xf32, #tpu.memory_space<vmem>>, vector<1x1x8x256xf32>
    %92 = vector.shape_cast %91 : vector<1x1x8x256xf32> to vector<8x256xf32>
    %93 = vector.broadcast %90 : f32 to vector<8x256xf32>
    %94 = arith.mulf %93, %92 : vector<8x256xf32>
    %95 = arith.addf %89, %94 : vector<8x256xf32>
    %c4_80 = arith.constant 4 : index
    %c1_81 = arith.constant 1 : index
    %96 = memref.load %arg3[%c4_80, %c1_81] : memref<9x3xf32, #tpu.memory_space<smem>>
    %c4_82 = arith.constant 4 : index
    %c0_83 = arith.constant 0 : index
    %c0_84 = arith.constant 0 : index
    %c0_85 = arith.constant 0 : index
    %97 = vector.load %arg2[%c4_82, %c0_83, %c0_84, %c0_85] : memref<9x1x8x256xf32, #tpu.memory_space<vmem>>, vector<1x1x8x256xf32>
    %98 = vector.shape_cast %97 : vector<1x1x8x256xf32> to vector<8x256xf32>
    %99 = vector.broadcast %96 : f32 to vector<8x256xf32>
    %100 = arith.mulf %99, %98 : vector<8x256xf32>
    %101 = arith.addf %95, %100 : vector<8x256xf32>
    %c5_86 = arith.constant 5 : index
    %c1_87 = arith.constant 1 : index
    %102 = memref.load %arg3[%c5_86, %c1_87] : memref<9x3xf32, #tpu.memory_space<smem>>
    %c5_88 = arith.constant 5 : index
    %c0_89 = arith.constant 0 : index
    %c0_90 = arith.constant 0 : index
    %c0_91 = arith.constant 0 : index
    %103 = vector.load %arg2[%c5_88, %c0_89, %c0_90, %c0_91] : memref<9x1x8x256xf32, #tpu.memory_space<vmem>>, vector<1x1x8x256xf32>
    %104 = vector.shape_cast %103 : vector<1x1x8x256xf32> to vector<8x256xf32>
    %105 = vector.broadcast %102 : f32 to vector<8x256xf32>
    %106 = arith.mulf %105, %104 : vector<8x256xf32>
    %107 = arith.addf %101, %106 : vector<8x256xf32>
    %c6_92 = arith.constant 6 : index
    %c1_93 = arith.constant 1 : index
    %108 = memref.load %arg3[%c6_92, %c1_93] : memref<9x3xf32, #tpu.memory_space<smem>>
    %c6_94 = arith.constant 6 : index
    %c0_95 = arith.constant 0 : index
    %c0_96 = arith.constant 0 : index
    %c0_97 = arith.constant 0 : index
    %109 = vector.load %arg2[%c6_94, %c0_95, %c0_96, %c0_97] : memref<9x1x8x256xf32, #tpu.memory_space<vmem>>, vector<1x1x8x256xf32>
    %110 = vector.shape_cast %109 : vector<1x1x8x256xf32> to vector<8x256xf32>
    %111 = vector.broadcast %108 : f32 to vector<8x256xf32>
    %112 = arith.mulf %111, %110 : vector<8x256xf32>
    %113 = arith.addf %107, %112 : vector<8x256xf32>
    %c7_98 = arith.constant 7 : index
    %c1_99 = arith.constant 1 : index
    %114 = memref.load %arg3[%c7_98, %c1_99] : memref<9x3xf32, #tpu.memory_space<smem>>
    %c7_100 = arith.constant 7 : index
    %c0_101 = arith.constant 0 : index
    %c0_102 = arith.constant 0 : index
    %c0_103 = arith.constant 0 : index
    %115 = vector.load %arg2[%c7_100, %c0_101, %c0_102, %c0_103] : memref<9x1x8x256xf32, #tpu.memory_space<vmem>>, vector<1x1x8x256xf32>
    %116 = vector.shape_cast %115 : vector<1x1x8x256xf32> to vector<8x256xf32>
    %117 = vector.broadcast %114 : f32 to vector<8x256xf32>
    %118 = arith.mulf %117, %116 : vector<8x256xf32>
    %119 = arith.addf %113, %118 : vector<8x256xf32>
    %c8_104 = arith.constant 8 : index
    %c1_105 = arith.constant 1 : index
    %120 = memref.load %arg3[%c8_104, %c1_105] : memref<9x3xf32, #tpu.memory_space<smem>>
    %c8_106 = arith.constant 8 : index
    %c0_107 = arith.constant 0 : index
    %c0_108 = arith.constant 0 : index
    %c0_109 = arith.constant 0 : index
    %121 = vector.load %arg2[%c8_106, %c0_107, %c0_108, %c0_109] : memref<9x1x8x256xf32, #tpu.memory_space<vmem>>, vector<1x1x8x256xf32>
    %122 = vector.shape_cast %121 : vector<1x1x8x256xf32> to vector<8x256xf32>
    %123 = vector.broadcast %120 : f32 to vector<8x256xf32>
    %124 = arith.mulf %123, %122 : vector<8x256xf32>
    %125 = arith.addf %119, %124 : vector<8x256xf32>
    %cst_110 = arith.constant 0.000000e+00 : f32
    %126 = vector.broadcast %cst_110 : f32 to vector<8x256xf32>
    %127 = arith.maximumf %125, %126 : vector<8x256xf32>
    %c1_111 = arith.constant 1 : index
    %c0_112 = arith.constant 0 : index
    %c0_113 = arith.constant 0 : index
    %128 = vector.load %arg5[%c1_111, %c0_112, %c0_113] : memref<3x256x128xf32, #tpu.memory_space<vmem>>, vector<1x256x128xf32>
    %129 = vector.shape_cast %128 : vector<1x256x128xf32> to vector<256x128xf32>
    %cst_114 = arith.constant dense<0.000000e+00> : vector<8x128xf32>
    %130 = tpu.matmul %127, %129, %cst_114 {dimension_numbers = #tpu.dot_dimension_numbers<[1], [0], [0], [1], [0, 0, 1, 1], [], []>} : vector<8x256xf32>, vector<256x128xf32>, vector<8x128xf32> -> vector<8x128xf32>
    %131 = arith.addf %67, %130 : vector<8x128xf32>
    %cst_115 = arith.constant 0.000000e+00 : f32
    %132 = vector.broadcast %cst_115 : f32 to vector<8x256xf32>
    %c2_116 = arith.constant 2 : index
    %133 = memref.load %arg4[%c2_116] : memref<3xf32, #tpu.memory_space<smem>>
    %134 = vector.broadcast %133 : f32 to vector<8x256xf32>
    %135 = arith.addf %132, %134 : vector<8x256xf32>
    %c0_117 = arith.constant 0 : index
    %c2_118 = arith.constant 2 : index
    %136 = memref.load %arg3[%c0_117, %c2_118] : memref<9x3xf32, #tpu.memory_space<smem>>
    %c0_119 = arith.constant 0 : index
    %c0_120 = arith.constant 0 : index
    %c0_121 = arith.constant 0 : index
    %c0_122 = arith.constant 0 : index
    %137 = vector.load %arg2[%c0_119, %c0_120, %c0_121, %c0_122] : memref<9x1x8x256xf32, #tpu.memory_space<vmem>>, vector<1x1x8x256xf32>
    %138 = vector.shape_cast %137 : vector<1x1x8x256xf32> to vector<8x256xf32>
    %139 = vector.broadcast %136 : f32 to vector<8x256xf32>
    %140 = arith.mulf %139, %138 : vector<8x256xf32>
    %141 = arith.addf %135, %140 : vector<8x256xf32>
    %c1_123 = arith.constant 1 : index
    %c2_124 = arith.constant 2 : index
    %142 = memref.load %arg3[%c1_123, %c2_124] : memref<9x3xf32, #tpu.memory_space<smem>>
    %c1_125 = arith.constant 1 : index
    %c0_126 = arith.constant 0 : index
    %c0_127 = arith.constant 0 : index
    %c0_128 = arith.constant 0 : index
    %143 = vector.load %arg2[%c1_125, %c0_126, %c0_127, %c0_128] : memref<9x1x8x256xf32, #tpu.memory_space<vmem>>, vector<1x1x8x256xf32>
    %144 = vector.shape_cast %143 : vector<1x1x8x256xf32> to vector<8x256xf32>
    %145 = vector.broadcast %142 : f32 to vector<8x256xf32>
    %146 = arith.mulf %145, %144 : vector<8x256xf32>
    %147 = arith.addf %141, %146 : vector<8x256xf32>
    %c2_129 = arith.constant 2 : index
    %c2_130 = arith.constant 2 : index
    %148 = memref.load %arg3[%c2_129, %c2_130] : memref<9x3xf32, #tpu.memory_space<smem>>
    %c2_131 = arith.constant 2 : index
    %c0_132 = arith.constant 0 : index
    %c0_133 = arith.constant 0 : index
    %c0_134 = arith.constant 0 : index
    %149 = vector.load %arg2[%c2_131, %c0_132, %c0_133, %c0_134] : memref<9x1x8x256xf32, #tpu.memory_space<vmem>>, vector<1x1x8x256xf32>
    %150 = vector.shape_cast %149 : vector<1x1x8x256xf32> to vector<8x256xf32>
    %151 = vector.broadcast %148 : f32 to vector<8x256xf32>
    %152 = arith.mulf %151, %150 : vector<8x256xf32>
    %153 = arith.addf %147, %152 : vector<8x256xf32>
    %c3_135 = arith.constant 3 : index
    %c2_136 = arith.constant 2 : index
    %154 = memref.load %arg3[%c3_135, %c2_136] : memref<9x3xf32, #tpu.memory_space<smem>>
    %c3_137 = arith.constant 3 : index
    %c0_138 = arith.constant 0 : index
    %c0_139 = arith.constant 0 : index
    %c0_140 = arith.constant 0 : index
    %155 = vector.load %arg2[%c3_137, %c0_138, %c0_139, %c0_140] : memref<9x1x8x256xf32, #tpu.memory_space<vmem>>, vector<1x1x8x256xf32>
    %156 = vector.shape_cast %155 : vector<1x1x8x256xf32> to vector<8x256xf32>
    %157 = vector.broadcast %154 : f32 to vector<8x256xf32>
    %158 = arith.mulf %157, %156 : vector<8x256xf32>
    %159 = arith.addf %153, %158 : vector<8x256xf32>
    %c4_141 = arith.constant 4 : index
    %c2_142 = arith.constant 2 : index
    %160 = memref.load %arg3[%c4_141, %c2_142] : memref<9x3xf32, #tpu.memory_space<smem>>
    %c4_143 = arith.constant 4 : index
    %c0_144 = arith.constant 0 : index
    %c0_145 = arith.constant 0 : index
    %c0_146 = arith.constant 0 : index
    %161 = vector.load %arg2[%c4_143, %c0_144, %c0_145, %c0_146] : memref<9x1x8x256xf32, #tpu.memory_space<vmem>>, vector<1x1x8x256xf32>
    %162 = vector.shape_cast %161 : vector<1x1x8x256xf32> to vector<8x256xf32>
    %163 = vector.broadcast %160 : f32 to vector<8x256xf32>
    %164 = arith.mulf %163, %162 : vector<8x256xf32>
    %165 = arith.addf %159, %164 : vector<8x256xf32>
    %c5_147 = arith.constant 5 : index
    %c2_148 = arith.constant 2 : index
    %166 = memref.load %arg3[%c5_147, %c2_148] : memref<9x3xf32, #tpu.memory_space<smem>>
    %c5_149 = arith.constant 5 : index
    %c0_150 = arith.constant 0 : index
    %c0_151 = arith.constant 0 : index
    %c0_152 = arith.constant 0 : index
    %167 = vector.load %arg2[%c5_149, %c0_150, %c0_151, %c0_152] : memref<9x1x8x256xf32, #tpu.memory_space<vmem>>, vector<1x1x8x256xf32>
    %168 = vector.shape_cast %167 : vector<1x1x8x256xf32> to vector<8x256xf32>
    %169 = vector.broadcast %166 : f32 to vector<8x256xf32>
    %170 = arith.mulf %169, %168 : vector<8x256xf32>
    %171 = arith.addf %165, %170 : vector<8x256xf32>
    %c6_153 = arith.constant 6 : index
    %c2_154 = arith.constant 2 : index
    %172 = memref.load %arg3[%c6_153, %c2_154] : memref<9x3xf32, #tpu.memory_space<smem>>
    %c6_155 = arith.constant 6 : index
    %c0_156 = arith.constant 0 : index
    %c0_157 = arith.constant 0 : index
    %c0_158 = arith.constant 0 : index
    %173 = vector.load %arg2[%c6_155, %c0_156, %c0_157, %c0_158] : memref<9x1x8x256xf32, #tpu.memory_space<vmem>>, vector<1x1x8x256xf32>
    %174 = vector.shape_cast %173 : vector<1x1x8x256xf32> to vector<8x256xf32>
    %175 = vector.broadcast %172 : f32 to vector<8x256xf32>
    %176 = arith.mulf %175, %174 : vector<8x256xf32>
    %177 = arith.addf %171, %176 : vector<8x256xf32>
    %c7_159 = arith.constant 7 : index
    %c2_160 = arith.constant 2 : index
    %178 = memref.load %arg3[%c7_159, %c2_160] : memref<9x3xf32, #tpu.memory_space<smem>>
    %c7_161 = arith.constant 7 : index
    %c0_162 = arith.constant 0 : index
    %c0_163 = arith.constant 0 : index
    %c0_164 = arith.constant 0 : index
    %179 = vector.load %arg2[%c7_161, %c0_162, %c0_163, %c0_164] : memref<9x1x8x256xf32, #tpu.memory_space<vmem>>, vector<1x1x8x256xf32>
    %180 = vector.shape_cast %179 : vector<1x1x8x256xf32> to vector<8x256xf32>
    %181 = vector.broadcast %178 : f32 to vector<8x256xf32>
    %182 = arith.mulf %181, %180 : vector<8x256xf32>
    %183 = arith.addf %177, %182 : vector<8x256xf32>
    %c8_165 = arith.constant 8 : index
    %c2_166 = arith.constant 2 : index
    %184 = memref.load %arg3[%c8_165, %c2_166] : memref<9x3xf32, #tpu.memory_space<smem>>
    %c8_167 = arith.constant 8 : index
    %c0_168 = arith.constant 0 : index
    %c0_169 = arith.constant 0 : index
    %c0_170 = arith.constant 0 : index
    %185 = vector.load %arg2[%c8_167, %c0_168, %c0_169, %c0_170] : memref<9x1x8x256xf32, #tpu.memory_space<vmem>>, vector<1x1x8x256xf32>
    %186 = vector.shape_cast %185 : vector<1x1x8x256xf32> to vector<8x256xf32>
    %187 = vector.broadcast %184 : f32 to vector<8x256xf32>
    %188 = arith.mulf %187, %186 : vector<8x256xf32>
    %189 = arith.addf %183, %188 : vector<8x256xf32>
    %cst_171 = arith.constant 0.000000e+00 : f32
    %190 = vector.broadcast %cst_171 : f32 to vector<8x256xf32>
    %191 = arith.maximumf %189, %190 : vector<8x256xf32>
    %c2_172 = arith.constant 2 : index
    %c0_173 = arith.constant 0 : index
    %c0_174 = arith.constant 0 : index
    %192 = vector.load %arg5[%c2_172, %c0_173, %c0_174] : memref<3x256x128xf32, #tpu.memory_space<vmem>>, vector<1x256x128xf32>
    %193 = vector.shape_cast %192 : vector<1x256x128xf32> to vector<256x128xf32>
    %cst_175 = arith.constant dense<0.000000e+00> : vector<8x128xf32>
    %194 = tpu.matmul %191, %193, %cst_175 {dimension_numbers = #tpu.dot_dimension_numbers<[1], [0], [0], [1], [0, 0, 1, 1], [], []>} : vector<8x256xf32>, vector<256x128xf32>, vector<8x128xf32> -> vector<8x128xf32>
    %195 = arith.addf %131, %194 : vector<8x128xf32>
    %c0_176 = arith.constant 0 : index
    %c0_177 = arith.constant 0 : index
    %196 = vector.load %arg13[%c0_176, %c0_177] : memref<8x128xf32, #tpu.memory_space<vmem>>, vector<8x128xf32>
    tpu.vector_store %arg13[%c0_176, %c0_177], %195 {strides = array<i32>} : memref<8x128xf32, #tpu.memory_space<vmem>>, vector<8x128xf32>,
    %197 = arith.index_cast %arg0 : i32 to index
    %198 = memref.load %arg1[%197] : memref<2xi32, #tpu.memory_space<smem>>
    %cst_178 = arith.constant 0.000000e+00 : f32
    %199 = vector.broadcast %cst_178 : f32 to vector<1x32xf32>
    %c0_i32 = arith.constant 0 : i32
    %200 = arith.index_cast %c0_i32 : i32 to index
    %c0_179 = arith.constant 0 : index
    %201 = vector.load %arg13[%200, %c0_179] : memref<8x128xf32, #tpu.memory_space<vmem>>, vector<1x128xf32>
    %c0_180 = arith.constant 0 : index
    %c0_181 = arith.constant 0 : index
    %202 = vector.load %arg7[%c0_180, %c0_181] : memref<32x128xf32, #tpu.memory_space<vmem>>, vector<32x128xf32>
    %cst_182 = arith.constant dense<0.000000e+00> : vector<1x128xf32>
    %203 = tpu.matmul %199, %202, %cst_182 {dimension_numbers = #tpu.dot_dimension_numbers<[1], [0], [0], [1], [0, 0, 1, 1], [], []>} : vector<1x32xf32>, vector<32x128xf32>, vector<1x128xf32> -> vector<1x128xf32>
    %204 = arith.addf %201, %203 : vector<1x128xf32>
    %205 = vector.extract_strided_slice %204 {offsets = [0, 0], sizes = [1, 32], strides = [1, 1]} : vector<1x128xf32> to vector<1x32xf32>
    %206 = arith.negf %205 : vector<1x32xf32>
    %207 = math.exp %206 : vector<1x32xf32>
    %cst_183 = arith.constant 1.000000e+00 : f32
    %208 = vector.broadcast %cst_183 : f32 to vector<1x32xf32>
    %209 = arith.addf %208, %207 : vector<1x32xf32>
    %210 = arith.divf %208, %209 : vector<1x32xf32>
    %211 = vector.extract_strided_slice %204 {offsets = [0, 32], sizes = [1, 32], strides = [1, 1]} : vector<1x128xf32> to vector<1x32xf32>
    %212 = arith.negf %211 : vector<1x32xf32>
    %213 = math.exp %212 : vector<1x32xf32>
    %cst_184 = arith.constant 1.000000e+00 : f32
    %214 = vector.broadcast %cst_184 : f32 to vector<1x32xf32>
    %215 = arith.addf %214, %213 : vector<1x32xf32>
    %216 = arith.divf %214, %215 : vector<1x32xf32>
    %217 = vector.extract_strided_slice %204 {offsets = [0, 64], sizes = [1, 32], strides = [1, 1]} : vector<1x128xf32> to vector<1x32xf32>
    %218 = math.tanh %217 : vector<1x32xf32>
    %219 = vector.extract_strided_slice %204 {offsets = [0, 96], sizes = [1, 32], strides = [1, 1]} : vector<1x128xf32> to vector<1x32xf32>
    %220 = arith.negf %219 : vector<1x32xf32>
    %221 = math.exp %220 : vector<1x32xf32>
    %cst_185 = arith.constant 1.000000e+00 : f32
    %222 = vector.broadcast %cst_185 : f32 to vector<1x32xf32>
    %223 = arith.addf %222, %221 : vector<1x32xf32>
    %224 = arith.divf %222, %223 : vector<1x32xf32>
    %225 = arith.mulf %216, %199 : vector<1x32xf32>
    %226 = arith.mulf %210, %218 : vector<1x32xf32>
    %227 = arith.addf %225, %226 : vector<1x32xf32>
    %228 = math.tanh %227 : vector<1x32xf32>
    %229 = arith.mulf %224, %228 : vector<1x32xf32>
    %c1_i32 = arith.constant 1 : i32
    %230 = arith.subi %198, %c1_i32 : i32
    %231 = arith.cmpi eq, %c0_i32, %230 : i32
    %232 = arith.select %231, %229, %199 : vector<1x32xf32>
    %c1_i32_186 = arith.constant 1 : i32
    %233 = arith.index_cast %c1_i32_186 : i32 to index
    %c0_187 = arith.constant 0 : index
    %234 = vector.load %arg13[%233, %c0_187] : memref<8x128xf32, #tpu.memory_space<vmem>>, vector<1x128xf32>
    %c0_188 = arith.constant 0 : index
    %c0_189 = arith.constant 0 : index
    %235 = vector.load %arg7[%c0_188, %c0_189] : memref<32x128xf32, #tpu.memory_space<vmem>>, vector<32x128xf32>
    %cst_190 = arith.constant dense<0.000000e+00> : vector<1x128xf32>
    %236 = tpu.matmul %229, %235, %cst_190 {dimension_numbers = #tpu.dot_dimension_numbers<[1], [0], [0], [1], [0, 0, 1, 1], [], []>} : vector<1x32xf32>, vector<32x128xf32>, vector<1x128xf32> -> vector<1x128xf32>
    %237 = arith.addf %234, %236 : vector<1x128xf32>
    %238 = vector.extract_strided_slice %237 {offsets = [0, 0], sizes = [1, 32], strides = [1, 1]} : vector<1x128xf32> to vector<1x32xf32>
    %239 = arith.negf %238 : vector<1x32xf32>
    %240 = math.exp %239 : vector<1x32xf32>
    %cst_191 = arith.constant 1.000000e+00 : f32
    %241 = vector.broadcast %cst_191 : f32 to vector<1x32xf32>
    %242 = arith.addf %241, %240 : vector<1x32xf32>
    %243 = arith.divf %241, %242 : vector<1x32xf32>
    %244 = vector.extract_strided_slice %237 {offsets = [0, 32], sizes = [1, 32], strides = [1, 1]} : vector<1x128xf32> to vector<1x32xf32>
    %245 = arith.negf %244 : vector<1x32xf32>
    %246 = math.exp %245 : vector<1x32xf32>
    %cst_192 = arith.constant 1.000000e+00 : f32
    %247 = vector.broadcast %cst_192 : f32 to vector<1x32xf32>
    %248 = arith.addf %247, %246 : vector<1x32xf32>
    %249 = arith.divf %247, %248 : vector<1x32xf32>
    %250 = vector.extract_strided_slice %237 {offsets = [0, 64], sizes = [1, 32], strides = [1, 1]} : vector<1x128xf32> to vector<1x32xf32>
    %251 = math.tanh %250 : vector<1x32xf32>
    %252 = vector.extract_strided_slice %237 {offsets = [0, 96], sizes = [1, 32], strides = [1, 1]} : vector<1x128xf32> to vector<1x32xf32>
    %253 = arith.negf %252 : vector<1x32xf32>
    %254 = math.exp %253 : vector<1x32xf32>
    %cst_193 = arith.constant 1.000000e+00 : f32
    %255 = vector.broadcast %cst_193 : f32 to vector<1x32xf32>
    %256 = arith.addf %255, %254 : vector<1x32xf32>
    %257 = arith.divf %255, %256 : vector<1x32xf32>
    %258 = arith.mulf %249, %227 : vector<1x32xf32>
    %259 = arith.mulf %243, %251 : vector<1x32xf32>
    %260 = arith.addf %258, %259 : vector<1x32xf32>
    %261 = math.tanh %260 : vector<1x32xf32>
    %262 = arith.mulf %257, %261 : vector<1x32xf32>
    %c1_i32_194 = arith.constant 1 : i32
    %263 = arith.subi %198, %c1_i32_194 : i32
    %264 = arith.cmpi eq, %c1_i32_186, %263 : i32
    %265 = arith.select %264, %262, %232 : vector<1x32xf32>
    %c2_i32 = arith.constant 2 : i32
    %266 = arith.index_cast %c2_i32 : i32 to index
    %c0_195 = arith.constant 0 : index
    %267 = vector.load %arg13[%266, %c0_195] : memref<8x128xf32, #tpu.memory_space<vmem>>, vector<1x128xf32>
    %c0_196 = arith.constant 0 : index
    %c0_197 = arith.constant 0 : index
    %268 = vector.load %arg7[%c0_196, %c0_197] : memref<32x128xf32, #tpu.memory_space<vmem>>, vector<32x128xf32>
    %cst_198 = arith.constant dense<0.000000e+00> : vector<1x128xf32>
    %269 = tpu.matmul %262, %268, %cst_198 {dimension_numbers = #tpu.dot_dimension_numbers<[1], [0], [0], [1], [0, 0, 1, 1], [], []>} : vector<1x32xf32>, vector<32x128xf32>, vector<1x128xf32> -> vector<1x128xf32>
    %270 = arith.addf %267, %269 : vector<1x128xf32>
    %271 = vector.extract_strided_slice %270 {offsets = [0, 0], sizes = [1, 32], strides = [1, 1]} : vector<1x128xf32> to vector<1x32xf32>
    %272 = arith.negf %271 : vector<1x32xf32>
    %273 = math.exp %272 : vector<1x32xf32>
    %cst_199 = arith.constant 1.000000e+00 : f32
    %274 = vector.broadcast %cst_199 : f32 to vector<1x32xf32>
    %275 = arith.addf %274, %273 : vector<1x32xf32>
    %276 = arith.divf %274, %275 : vector<1x32xf32>
    %277 = vector.extract_strided_slice %270 {offsets = [0, 32], sizes = [1, 32], strides = [1, 1]} : vector<1x128xf32> to vector<1x32xf32>
    %278 = arith.negf %277 : vector<1x32xf32>
    %279 = math.exp %278 : vector<1x32xf32>
    %cst_200 = arith.constant 1.000000e+00 : f32
    %280 = vector.broadcast %cst_200 : f32 to vector<1x32xf32>
    %281 = arith.addf %280, %279 : vector<1x32xf32>
    %282 = arith.divf %280, %281 : vector<1x32xf32>
    %283 = vector.extract_strided_slice %270 {offsets = [0, 64], sizes = [1, 32], strides = [1, 1]} : vector<1x128xf32> to vector<1x32xf32>
    %284 = math.tanh %283 : vector<1x32xf32>
    %285 = vector.extract_strided_slice %270 {offsets = [0, 96], sizes = [1, 32], strides = [1, 1]} : vector<1x128xf32> to vector<1x32xf32>
    %286 = arith.negf %285 : vector<1x32xf32>
    %287 = math.exp %286 : vector<1x32xf32>
    %cst_201 = arith.constant 1.000000e+00 : f32
    %288 = vector.broadcast %cst_201 : f32 to vector<1x32xf32>
    %289 = arith.addf %288, %287 : vector<1x32xf32>
    %290 = arith.divf %288, %289 : vector<1x32xf32>
    %291 = arith.mulf %282, %260 : vector<1x32xf32>
    %292 = arith.mulf %276, %284 : vector<1x32xf32>
    %293 = arith.addf %291, %292 : vector<1x32xf32>
    %294 = math.tanh %293 : vector<1x32xf32>
    %295 = arith.mulf %290, %294 : vector<1x32xf32>
    %c1_i32_202 = arith.constant 1 : i32
    %296 = arith.subi %198, %c1_i32_202 : i32
    %297 = arith.cmpi eq, %c2_i32, %296 : i32
    %298 = arith.select %297, %295, %265 : vector<1x32xf32>
    %c3_i32 = arith.constant 3 : i32
    %299 = arith.index_cast %c3_i32 : i32 to index
    %c0_203 = arith.constant 0 : index
    %300 = vector.load %arg13[%299, %c0_203] : memref<8x128xf32, #tpu.memory_space<vmem>>, vector<1x128xf32>
    %c0_204 = arith.constant 0 : index
    %c0_205 = arith.constant 0 : index
    %301 = vector.load %arg7[%c0_204, %c0_205] : memref<32x128xf32, #tpu.memory_space<vmem>>, vector<32x128xf32>
    %cst_206 = arith.constant dense<0.000000e+00> : vector<1x128xf32>
    %302 = tpu.matmul %295, %301, %cst_206 {dimension_numbers = #tpu.dot_dimension_numbers<[1], [0], [0], [1], [0, 0, 1, 1], [], []>} : vector<1x32xf32>, vector<32x128xf32>, vector<1x128xf32> -> vector<1x128xf32>
    %303 = arith.addf %300, %302 : vector<1x128xf32>
    %304 = vector.extract_strided_slice %303 {offsets = [0, 0], sizes = [1, 32], strides = [1, 1]} : vector<1x128xf32> to vector<1x32xf32>
    %305 = arith.negf %304 : vector<1x32xf32>
    %306 = math.exp %305 : vector<1x32xf32>
    %cst_207 = arith.constant 1.000000e+00 : f32
    %307 = vector.broadcast %cst_207 : f32 to vector<1x32xf32>
    %308 = arith.addf %307, %306 : vector<1x32xf32>
    %309 = arith.divf %307, %308 : vector<1x32xf32>
    %310 = vector.extract_strided_slice %303 {offsets = [0, 32], sizes = [1, 32], strides = [1, 1]} : vector<1x128xf32> to vector<1x32xf32>
    %311 = arith.negf %310 : vector<1x32xf32>
    %312 = math.exp %311 : vector<1x32xf32>
    %cst_208 = arith.constant 1.000000e+00 : f32
    %313 = vector.broadcast %cst_208 : f32 to vector<1x32xf32>
    %314 = arith.addf %313, %312 : vector<1x32xf32>
    %315 = arith.divf %313, %314 : vector<1x32xf32>
    %316 = vector.extract_strided_slice %303 {offsets = [0, 64], sizes = [1, 32], strides = [1, 1]} : vector<1x128xf32> to vector<1x32xf32>
    %317 = math.tanh %316 : vector<1x32xf32>
    %318 = vector.extract_strided_slice %303 {offsets = [0, 96], sizes = [1, 32], strides = [1, 1]} : vector<1x128xf32> to vector<1x32xf32>
    %319 = arith.negf %318 : vector<1x32xf32>
    %320 = math.exp %319 : vector<1x32xf32>
    %cst_209 = arith.constant 1.000000e+00 : f32
    %321 = vector.broadcast %cst_209 : f32 to vector<1x32xf32>
    %322 = arith.addf %321, %320 : vector<1x32xf32>
    %323 = arith.divf %321, %322 : vector<1x32xf32>
    %324 = arith.mulf %315, %293 : vector<1x32xf32>
    %325 = arith.mulf %309, %317 : vector<1x32xf32>
    %326 = arith.addf %324, %325 : vector<1x32xf32>
    %327 = math.tanh %326 : vector<1x32xf32>
    %328 = arith.mulf %323, %327 : vector<1x32xf32>
    %c1_i32_210 = arith.constant 1 : i32
    %329 = arith.subi %198, %c1_i32_210 : i32
    %330 = arith.cmpi eq, %c3_i32, %329 : i32
    %331 = arith.select %330, %328, %298 : vector<1x32xf32>
    %c4_i32 = arith.constant 4 : i32
    %332 = arith.index_cast %c4_i32 : i32 to index
    %c0_211 = arith.constant 0 : index
    %333 = vector.load %arg13[%332, %c0_211] : memref<8x128xf32, #tpu.memory_space<vmem>>, vector<1x128xf32>
    %c0_212 = arith.constant 0 : index
    %c0_213 = arith.constant 0 : index
    %334 = vector.load %arg7[%c0_212, %c0_213] : memref<32x128xf32, #tpu.memory_space<vmem>>, vector<32x128xf32>
    %cst_214 = arith.constant dense<0.000000e+00> : vector<1x128xf32>
    %335 = tpu.matmul %328, %334, %cst_214 {dimension_numbers = #tpu.dot_dimension_numbers<[1], [0], [0], [1], [0, 0, 1, 1], [], []>} : vector<1x32xf32>, vector<32x128xf32>, vector<1x128xf32> -> vector<1x128xf32>
    %336 = arith.addf %333, %335 : vector<1x128xf32>
    %337 = vector.extract_strided_slice %336 {offsets = [0, 0], sizes = [1, 32], strides = [1, 1]} : vector<1x128xf32> to vector<1x32xf32>
    %338 = arith.negf %337 : vector<1x32xf32>
    %339 = math.exp %338 : vector<1x32xf32>
    %cst_215 = arith.constant 1.000000e+00 : f32
    %340 = vector.broadcast %cst_215 : f32 to vector<1x32xf32>
    %341 = arith.addf %340, %339 : vector<1x32xf32>
    %342 = arith.divf %340, %341 : vector<1x32xf32>
    %343 = vector.extract_strided_slice %336 {offsets = [0, 32], sizes = [1, 32], strides = [1, 1]} : vector<1x128xf32> to vector<1x32xf32>
    %344 = arith.negf %343 : vector<1x32xf32>
    %345 = math.exp %344 : vector<1x32xf32>
    %cst_216 = arith.constant 1.000000e+00 : f32
    %346 = vector.broadcast %cst_216 : f32 to vector<1x32xf32>
    %347 = arith.addf %346, %345 : vector<1x32xf32>
    %348 = arith.divf %346, %347 : vector<1x32xf32>
    %349 = vector.extract_strided_slice %336 {offsets = [0, 64], sizes = [1, 32], strides = [1, 1]} : vector<1x128xf32> to vector<1x32xf32>
    %350 = math.tanh %349 : vector<1x32xf32>
    %351 = vector.extract_strided_slice %336 {offsets = [0, 96], sizes = [1, 32], strides = [1, 1]} : vector<1x128xf32> to vector<1x32xf32>
    %352 = arith.negf %351 : vector<1x32xf32>
    %353 = math.exp %352 : vector<1x32xf32>
    %cst_217 = arith.constant 1.000000e+00 : f32
    %354 = vector.broadcast %cst_217 : f32 to vector<1x32xf32>
    %355 = arith.addf %354, %353 : vector<1x32xf32>
    %356 = arith.divf %354, %355 : vector<1x32xf32>
    %357 = arith.mulf %348, %326 : vector<1x32xf32>
    %358 = arith.mulf %342, %350 : vector<1x32xf32>
    %359 = arith.addf %357, %358 : vector<1x32xf32>
    %360 = math.tanh %359 : vector<1x32xf32>
    %361 = arith.mulf %356, %360 : vector<1x32xf32>
    %c1_i32_218 = arith.constant 1 : i32
    %362 = arith.subi %198, %c1_i32_218 : i32
    %363 = arith.cmpi eq, %c4_i32, %362 : i32
    %364 = arith.select %363, %361, %331 : vector<1x32xf32>
    %c5_i32 = arith.constant 5 : i32
    %365 = arith.index_cast %c5_i32 : i32 to index
    %c0_219 = arith.constant 0 : index
    %366 = vector.load %arg13[%365, %c0_219] : memref<8x128xf32, #tpu.memory_space<vmem>>, vector<1x128xf32>
    %c0_220 = arith.constant 0 : index
    %c0_221 = arith.constant 0 : index
    %367 = vector.load %arg7[%c0_220, %c0_221] : memref<32x128xf32, #tpu.memory_space<vmem>>, vector<32x128xf32>
    %cst_222 = arith.constant dense<0.000000e+00> : vector<1x128xf32>
    %368 = tpu.matmul %361, %367, %cst_222 {dimension_numbers = #tpu.dot_dimension_numbers<[1], [0], [0], [1], [0, 0, 1, 1], [], []>} : vector<1x32xf32>, vector<32x128xf32>, vector<1x128xf32> -> vector<1x128xf32>
    %369 = arith.addf %366, %368 : vector<1x128xf32>
    %370 = vector.extract_strided_slice %369 {offsets = [0, 0], sizes = [1, 32], strides = [1, 1]} : vector<1x128xf32> to vector<1x32xf32>
    %371 = arith.negf %370 : vector<1x32xf32>
    %372 = math.exp %371 : vector<1x32xf32>
    %cst_223 = arith.constant 1.000000e+00 : f32
    %373 = vector.broadcast %cst_223 : f32 to vector<1x32xf32>
    %374 = arith.addf %373, %372 : vector<1x32xf32>
    %375 = arith.divf %373, %374 : vector<1x32xf32>
    %376 = vector.extract_strided_slice %369 {offsets = [0, 32], sizes = [1, 32], strides = [1, 1]} : vector<1x128xf32> to vector<1x32xf32>
    %377 = arith.negf %376 : vector<1x32xf32>
    %378 = math.exp %377 : vector<1x32xf32>
    %cst_224 = arith.constant 1.000000e+00 : f32
    %379 = vector.broadcast %cst_224 : f32 to vector<1x32xf32>
    %380 = arith.addf %379, %378 : vector<1x32xf32>
    %381 = arith.divf %379, %380 : vector<1x32xf32>
    %382 = vector.extract_strided_slice %369 {offsets = [0, 64], sizes = [1, 32], strides = [1, 1]} : vector<1x128xf32> to vector<1x32xf32>
    %383 = math.tanh %382 : vector<1x32xf32>
    %384 = vector.extract_strided_slice %369 {offsets = [0, 96], sizes = [1, 32], strides = [1, 1]} : vector<1x128xf32> to vector<1x32xf32>
    %385 = arith.negf %384 : vector<1x32xf32>
    %386 = math.exp %385 : vector<1x32xf32>
    %cst_225 = arith.constant 1.000000e+00 : f32
    %387 = vector.broadcast %cst_225 : f32 to vector<1x32xf32>
    %388 = arith.addf %387, %386 : vector<1x32xf32>
    %389 = arith.divf %387, %388 : vector<1x32xf32>
    %390 = arith.mulf %381, %359 : vector<1x32xf32>
    %391 = arith.mulf %375, %383 : vector<1x32xf32>
    %392 = arith.addf %390, %391 : vector<1x32xf32>
    %393 = math.tanh %392 : vector<1x32xf32>
    %394 = arith.mulf %389, %393 : vector<1x32xf32>
    %c1_i32_226 = arith.constant 1 : i32
    %395 = arith.subi %198, %c1_i32_226 : i32
    %396 = arith.cmpi eq, %c5_i32, %395 : i32
    %397 = arith.select %396, %394, %364 : vector<1x32xf32>
    %c6_i32 = arith.constant 6 : i32
    %398 = arith.index_cast %c6_i32 : i32 to index
    %c0_227 = arith.constant 0 : index
    %399 = vector.load %arg13[%398, %c0_227] : memref<8x128xf32, #tpu.memory_space<vmem>>, vector<1x128xf32>
    %c0_228 = arith.constant 0 : index
    %c0_229 = arith.constant 0 : index
    %400 = vector.load %arg7[%c0_228, %c0_229] : memref<32x128xf32, #tpu.memory_space<vmem>>, vector<32x128xf32>
    %cst_230 = arith.constant dense<0.000000e+00> : vector<1x128xf32>
    %401 = tpu.matmul %394, %400, %cst_230 {dimension_numbers = #tpu.dot_dimension_numbers<[1], [0], [0], [1], [0, 0, 1, 1], [], []>} : vector<1x32xf32>, vector<32x128xf32>, vector<1x128xf32> -> vector<1x128xf32>
    %402 = arith.addf %399, %401 : vector<1x128xf32>
    %403 = vector.extract_strided_slice %402 {offsets = [0, 0], sizes = [1, 32], strides = [1, 1]} : vector<1x128xf32> to vector<1x32xf32>
    %404 = arith.negf %403 : vector<1x32xf32>
    %405 = math.exp %404 : vector<1x32xf32>
    %cst_231 = arith.constant 1.000000e+00 : f32
    %406 = vector.broadcast %cst_231 : f32 to vector<1x32xf32>
    %407 = arith.addf %406, %405 : vector<1x32xf32>
    %408 = arith.divf %406, %407 : vector<1x32xf32>
    %409 = vector.extract_strided_slice %402 {offsets = [0, 32], sizes = [1, 32], strides = [1, 1]} : vector<1x128xf32> to vector<1x32xf32>
    %410 = arith.negf %409 : vector<1x32xf32>
    %411 = math.exp %410 : vector<1x32xf32>
    %cst_232 = arith.constant 1.000000e+00 : f32
    %412 = vector.broadcast %cst_232 : f32 to vector<1x32xf32>
    %413 = arith.addf %412, %411 : vector<1x32xf32>
    %414 = arith.divf %412, %413 : vector<1x32xf32>
    %415 = vector.extract_strided_slice %402 {offsets = [0, 64], sizes = [1, 32], strides = [1, 1]} : vector<1x128xf32> to vector<1x32xf32>
    %416 = math.tanh %415 : vector<1x32xf32>
    %417 = vector.extract_strided_slice %402 {offsets = [0, 96], sizes = [1, 32], strides = [1, 1]} : vector<1x128xf32> to vector<1x32xf32>
    %418 = arith.negf %417 : vector<1x32xf32>
    %419 = math.exp %418 : vector<1x32xf32>
    %cst_233 = arith.constant 1.000000e+00 : f32
    %420 = vector.broadcast %cst_233 : f32 to vector<1x32xf32>
    %421 = arith.addf %420, %419 : vector<1x32xf32>
    %422 = arith.divf %420, %421 : vector<1x32xf32>
    %423 = arith.mulf %414, %392 : vector<1x32xf32>
    %424 = arith.mulf %408, %416 : vector<1x32xf32>
    %425 = arith.addf %423, %424 : vector<1x32xf32>
    %426 = math.tanh %425 : vector<1x32xf32>
    %427 = arith.mulf %422, %426 : vector<1x32xf32>
    %c1_i32_234 = arith.constant 1 : i32
    %428 = arith.subi %198, %c1_i32_234 : i32
    %429 = arith.cmpi eq, %c6_i32, %428 : i32
    %430 = arith.select %429, %427, %397 : vector<1x32xf32>
    %c7_i32 = arith.constant 7 : i32
    %431 = arith.index_cast %c7_i32 : i32 to index
    %c0_235 = arith.constant 0 : index
    %432 = vector.load %arg13[%431, %c0_235] : memref<8x128xf32, #tpu.memory_space<vmem>>, vector<1x128xf32>
    %c0_236 = arith.constant 0 : index
    %c0_237 = arith.constant 0 : index
    %433 = vector.load %arg7[%c0_236, %c0_237] : memref<32x128xf32, #tpu.memory_space<vmem>>, vector<32x128xf32>
    %cst_238 = arith.constant dense<0.000000e+00> : vector<1x128xf32>
    %434 = tpu.matmul %427, %433, %cst_238 {dimension_numbers = #tpu.dot_dimension_numbers<[1], [0], [0], [1], [0, 0, 1, 1], [], []>} : vector<1x32xf32>, vector<32x128xf32>, vector<1x128xf32> -> vector<1x128xf32>
    %435 = arith.addf %432, %434 : vector<1x128xf32>
    %436 = vector.extract_strided_slice %435 {offsets = [0, 0], sizes = [1, 32], strides = [1, 1]} : vector<1x128xf32> to vector<1x32xf32>
    %437 = arith.negf %436 : vector<1x32xf32>
    %438 = math.exp %437 : vector<1x32xf32>
    %cst_239 = arith.constant 1.000000e+00 : f32
    %439 = vector.broadcast %cst_239 : f32 to vector<1x32xf32>
    %440 = arith.addf %439, %438 : vector<1x32xf32>
    %441 = arith.divf %439, %440 : vector<1x32xf32>
    %442 = vector.extract_strided_slice %435 {offsets = [0, 32], sizes = [1, 32], strides = [1, 1]} : vector<1x128xf32> to vector<1x32xf32>
    %443 = arith.negf %442 : vector<1x32xf32>
    %444 = math.exp %443 : vector<1x32xf32>
    %cst_240 = arith.constant 1.000000e+00 : f32
    %445 = vector.broadcast %cst_240 : f32 to vector<1x32xf32>
    %446 = arith.addf %445, %444 : vector<1x32xf32>
    %447 = arith.divf %445, %446 : vector<1x32xf32>
    %448 = vector.extract_strided_slice %435 {offsets = [0, 64], sizes = [1, 32], strides = [1, 1]} : vector<1x128xf32> to vector<1x32xf32>
    %449 = math.tanh %448 : vector<1x32xf32>
    %450 = vector.extract_strided_slice %435 {offsets = [0, 96], sizes = [1, 32], strides = [1, 1]} : vector<1x128xf32> to vector<1x32xf32>
    %451 = arith.negf %450 : vector<1x32xf32>
    %452 = math.exp %451 : vector<1x32xf32>
    %cst_241 = arith.constant 1.000000e+00 : f32
    %453 = vector.broadcast %cst_241 : f32 to vector<1x32xf32>
    %454 = arith.addf %453, %452 : vector<1x32xf32>
    %455 = arith.divf %453, %454 : vector<1x32xf32>
    %456 = arith.mulf %447, %425 : vector<1x32xf32>
    %457 = arith.mulf %441, %449 : vector<1x32xf32>
    %458 = arith.addf %456, %457 : vector<1x32xf32>
    %459 = math.tanh %458 : vector<1x32xf32>
    %460 = arith.mulf %455, %459 : vector<1x32xf32>
    %c1_i32_242 = arith.constant 1 : i32
    %461 = arith.subi %198, %c1_i32_242 : i32
    %462 = arith.cmpi eq, %c7_i32, %461 : i32
    %463 = arith.select %462, %460, %430 : vector<1x32xf32>
    %c8_i32 = arith.constant 8 : i32
    %c0_243 = arith.constant 0 : index
    %c0_244 = arith.constant 0 : index
    %464 = vector.load %arg8[%c0_243, %c0_244] : memref<32x64xf32, #tpu.memory_space<vmem>>, vector<32x64xf32>
    %cst_245 = arith.constant dense<0.000000e+00> : vector<1x64xf32>
    %465 = tpu.matmul %463, %464, %cst_245 {dimension_numbers = #tpu.dot_dimension_numbers<[1], [0], [0], [1], [0, 0, 1, 1], [], []>} : vector<1x32xf32>, vector<32x64xf32>, vector<1x64xf32> -> vector<1x64xf32>
    %c0_246 = arith.constant 0 : index
    %c0_247 = arith.constant 0 : index
    %466 = vector.load %arg9[%c0_246, %c0_247] : memref<1x64xf32, #tpu.memory_space<vmem>>, vector<1x64xf32>
    %467 = arith.addf %465, %466 : vector<1x64xf32>
    %468 = math.tanh %467 : vector<1x64xf32>
    %c0_248 = arith.constant 0 : index
    %c0_249 = arith.constant 0 : index
    %469 = vector.load %arg10[%c0_248, %c0_249] : memref<64x1xf32, #tpu.memory_space<vmem>>, vector<64x1xf32>
    %cst_250 = arith.constant dense<0.000000e+00> : vector<1x1xf32>
    %470 = tpu.matmul %468, %469, %cst_250 {dimension_numbers = #tpu.dot_dimension_numbers<[1], [0], [0], [1], [0, 0, 1, 1], [], []>} : vector<1x64xf32>, vector<64x1xf32>, vector<1x1xf32> -> vector<1x1xf32>
    %c0_251 = arith.constant 0 : index
    %c0_252 = arith.constant 0 : index
    %471 = vector.load %arg11[%c0_251, %c0_252] : memref<1x1xf32, #tpu.memory_space<vmem>>, vector<1x1xf32>
    %472 = arith.addf %470, %471 : vector<1x1xf32>
    %c0_253 = arith.constant 0 : index
    %c0_254 = arith.constant 0 : index
    %c0_255 = arith.constant 0 : index
    %473 = vector.load %arg12[%c0_253, %c0_254, %c0_255] : memref<1x1x1xf32, #tpu.memory_space<vmem>>, vector<1x1x1xf32>
    %474 = vector.shape_cast %473 : vector<1x1x1xf32> to vector<1x1xf32>
    %475 = vector.shape_cast %472 : vector<1x1xf32> to vector<1x1x1xf32>
    tpu.vector_store %arg12[%c0_253, %c0_254, %c0_255], %475 {strides = array<i32>} : memref<1x1x1xf32, #tpu.memory_space<vmem>>, vector<1x1x1xf32>,
    return
  }
  func.func @transform_0(%arg0: i32, %arg1: memref<2xi32, #tpu.memory_space<smem>>) -> (i32, i32, i32, i32) {
    %c0_i32 = arith.constant 0 : i32
    %c0_i32_0 = arith.constant 0 : i32
    %c0_i32_1 = arith.constant 0 : i32
    %c0_i32_2 = arith.constant 0 : i32
    return %c0_i32, %arg0, %c0_i32_0, %c0_i32_1 : i32, i32, i32, i32
  }
  func.func @transform_1(%arg0: i32, %arg1: memref<2xi32, #tpu.memory_space<smem>>) -> (i32, i32) {
    %c0_i32 = arith.constant 0 : i32
    %c0_i32_0 = arith.constant 0 : i32
    %c0_i32_1 = arith.constant 0 : i32
    return %c0_i32, %c0_i32_0 : i32, i32
  }
  func.func @transform_2(%arg0: i32, %arg1: memref<2xi32, #tpu.memory_space<smem>>) -> i32 {
    %c0_i32 = arith.constant 0 : i32
    %c0_i32_0 = arith.constant 0 : i32
    return %c0_i32 : i32
  }
  func.func @transform_3(%arg0: i32, %arg1: memref<2xi32, #tpu.memory_space<smem>>) -> (i32, i32, i32) {
    %c0_i32 = arith.constant 0 : i32
    %c0_i32_0 = arith.constant 0 : i32
    %c0_i32_1 = arith.constant 0 : i32
    %c0_i32_2 = arith.constant 0 : i32
    return %c0_i32, %c0_i32_0, %c0_i32_1 : i32, i32, i32
  }
  func.func @transform_4(%arg0: i32, %arg1: memref<2xi32, #tpu.memory_space<smem>>) -> (i32, i32) {
    %c0_i32 = arith.constant 0 : i32
    %c0_i32_0 = arith.constant 0 : i32
    %c0_i32_1 = arith.constant 0 : i32
    return %c0_i32, %c0_i32_0 : i32, i32
  }
  func.func @transform_5(%arg0: i32, %arg1: memref<2xi32, #tpu.memory_space<smem>>) -> (i32, i32) {
    %c0_i32 = arith.constant 0 : i32
    %c0_i32_0 = arith.constant 0 : i32
    %c0_i32_1 = arith.constant 0 : i32
    return %c0_i32, %c0_i32_0 : i32, i32
  }
  func.func @transform_6(%arg0: i32, %arg1: memref<2xi32, #tpu.memory_space<smem>>) -> (i32, i32) {
    %c0_i32 = arith.constant 0 : i32
    %c0_i32_0 = arith.constant 0 : i32
    %c0_i32_1 = arith.constant 0 : i32
    return %c0_i32, %c0_i32_0 : i32, i32
  }
  func.func @transform_7(%arg0: i32, %arg1: memref<2xi32, #tpu.memory_space<smem>>) -> (i32, i32) {
    %c0_i32 = arith.constant 0 : i32
    %c0_i32_0 = arith.constant 0 : i32
    %c0_i32_1 = arith.constant 0 : i32
    return %c0_i32, %c0_i32_0 : i32, i32
  }
  func.func @transform_8(%arg0: i32, %arg1: memref<2xi32, #tpu.memory_space<smem>>) -> (i32, i32) {
    %c0_i32 = arith.constant 0 : i32
    %c0_i32_0 = arith.constant 0 : i32
    %c0_i32_1 = arith.constant 0 : i32
    return %c0_i32, %c0_i32_0 : i32, i32
  }
  func.func @transform_9(%arg0: i32, %arg1: memref<2xi32, #tpu.memory_space<smem>>) -> (i32, i32) {
    %c0_i32 = arith.constant 0 : i32
    %c0_i32_0 = arith.constant 0 : i32
    %c0_i32_1 = arith.constant 0 : i32
    return %c0_i32, %c0_i32_0 : i32, i32
  }
  func.func @transform_10(%arg0: i32, %arg1: memref<2xi32, #tpu.memory_space<smem>>) -> (i32, i32, i32) {
    %c0_i32 = arith.constant 0 : i32
    %c0_i32_0 = arith.constant 0 : i32
    %c0_i32_1 = arith.constant 0 : i32
    return %arg0, %c0_i32, %c0_i32_0 : i32, i32, i32
  }
}

</mosaic_0001>

<llo_original>
// kernel: image_lstm_forward.1
$region0: #{image_lstm_forward.1}
  #allocation0 [shape = 'u32[]', space=smem, size = 0x4, offset = 0x4, fixed_abs, tag = 'smem constant byte address 0x4 - core index']
  #allocation1 [shape = 'u32[144,128]{1,0:T(1,128)}', space=vmem, size = 0x12000, scoped, tag = 'internal scratch']
  #allocation2 [shape = 'f32[8,128]{1,0:T(8,128)}', space=vmem, size = 0x1000, scoped, tag = 'scratch operand']
  #allocation3 [shape = 's32[1]{0}', space=sflag, size = 0x4, scoped, tag = 'scoped memory for image_lstm_forward.1']
  #allocation4 [shape = 'u8[512]{0}', space=smem, size = 0x200, scoped, tag = 'prefetched SMEM operand 0']
  #allocation5 [shape = 'f32[1,1]{1,0:T(1,128)S(1)}', space=vmem, size = 0x200, scoped, tag = 'scoped memory for image_lstm_forward.1']
  %s0 = inlined_call_operand.vmem [shape: s32[2], index: 0, kind: input, shape index: {}]
  %s1 = inlined_call_operand.vmem [shape: f32[9,2,8,256], index: 1, kind: input, shape index: {}]
  %s2 = inlined_call_operand.vmem [shape: f32[9,3], index: 2, kind: input, shape index: {}]
  %s3 = inlined_call_operand.vmem [shape: f32[3], index: 3, kind: input, shape index: {}]
  %s4 = inlined_call_operand.vmem [shape: f32[3,256,128], index: 4, kind: input, shape index: {}]
  %s5 = inlined_call_operand.vmem [shape: f32[1,128], index: 5, kind: input, shape index: {}]
  %s6 = inlined_call_operand.vmem [shape: f32[32,128], index: 6, kind: input, shape index: {}]
  %s7 = inlined_call_operand.vmem [shape: f32[32,64], index: 7, kind: input, shape index: {}]
  %s8 = inlined_call_operand.vmem [shape: f32[1,64], index: 8, kind: input, shape index: {}]
  %s9 = inlined_call_operand.vmem [shape: f32[64,1], index: 9, kind: input, shape index: {}]
  %s10 = inlined_call_operand.<no memory space> [shape: f32[1,1], index: 10, kind: input, shape index: {}]
  %s11 = inlined_call_operand.vmem [shape: f32[2,1,1], index: 11, kind: output, shape index: {}]
  %s12 = sld [smem:[#allocation0]]
  $region104: #{image_lstm_forward.1} parent=0
    _
  %s14 = ssub.s32 1, %s12
  %s15 = scalar_select 0, %s14, %s12
  %s16 = sshll.u32 %s0, 4
  %s17 = int_to_ptr.vmem [resolvable:$true] %s16
  %19 = dma.vmem_to_smem %s17, 16, [#allocation4], [#allocation3]
  %v20 = vstv %s10
  %21 = vst [vmem:[#allocation5] sm:$0x1] %v20
  %22 = dma.done [#allocation3], 16
  %23 = sfence
  $region1: #{image_lstm_forward.1} parent=0
    #allocation6 [shape = 'u8[147456]{0}', space=vmem, size = 0x24000, scoped, tag = 'input window, operand 1']
    #allocation7 [shape = 'u8[8192]{0}', space=smem, size = 0x2000, scoped, tag = 'input window, operand 2, single buffered']
    #allocation8 [shape = 's32[2]{0}', space=sflag, size = 0x8, scoped, tag = 'scoped memory for image_lstm_forward.1']
    #allocation9 [shape = 'u8[512]{0}', space=smem, size = 0x200, scoped, tag = 'input window, operand 3, single buffered']
    #allocation10 [shape = 's32[1]{0}', space=sflag, size = 0x4, scoped, tag = 'scoped memory for image_lstm_forward.1']
    %24 = vsyncpa [#allocation8], 0
    %25 = vsyncpa [#allocation10], 0
    loop: start=0, step=1, limit=4
    $region2: #{image_lstm_forward.1} parent=1 // loop_pre_header
      _
    $region3: #{image_lstm_forward.1} parent=1 // loop_header
      %s27 = sphi 0, %s31
      %p28 = scmp.ge.s32.totalorder %s27, 4
      %s37 = sphi 0, %s39
      %s40 = sphi 0, %s37
      %s41 = sphi 0, %s40
      %s57 = sphi 0, %s41
      %s61 = sphi 0, %s61
      %s63 = sphi 0, %s61
      %s64 = sphi 0, %s63
      %s78 = sphi 0, %s64
      %s82 = sphi 0, %s82
      %s84 = sphi 0, %s82
      %s85 = sphi 0, %s84
      %s99 = sphi 0, %s85
      %s103 = sphi 0, %s103
      %s105 = sphi 0, %s103
      %s106 = sphi 0, %s105
      %s120 = sphi 0, %s106
      %s124 = sphi 0, %s124
      %s126 = sphi 0, %s124
      %s127 = sphi 0, %s126
      %s141 = sphi 0, %s127
      %s145 = sphi 0, %s145
      %s147 = sphi 0, %s145
      %s148 = sphi 0, %s147
      %s162 = sphi 0, %s148
      %s166 = sphi 0, %s166
      %s168 = sphi 0, %s166
      %s169 = sphi 0, %s168
      %s183 = sphi 0, %s169
      %s187 = sphi 0, %s187
      %s189 = sphi 0, %s187
      %s190 = sphi 0, %s189
      %s204 = sphi 0, %s190
      %s208 = sphi 0, %s208
      %s210 = sphi 0, %s208
      %s211 = sphi 0, %s210
      %s225 = sphi 0, %s211
      %s229 = sphi 0, %s229
      %s231 = sphi 0, %s229
      %s232 = sphi 0, %s231
      %s246 = sphi 0, %s232
      %s252 = sphi 0, %s254
      %s255 = sphi 0, %s252
      %s256 = sphi 0, %s255
      %s272 = sphi 0, %s256
    $region4: #{image_lstm_forward.1} parent=1 // loop_header_branch
      %30 = sbr.rel (%p28) target = $region8
    $region5: #{image_lstm_forward.1} parent=1 // loop_body
      %s32 = ssub.s32 %s27, 1
      %s33 = ssub.s32 %s27, 2
      %s34 = sadd.s32 %s27, 1
      %s35 = ssub.s32 %s27, %s34
      %p36 = scmp.eq.s32.totalorder %s35, 0
      %s38 = sadd.s32 %s37, 1
      %s39 = scalar_select %p36, %s37, %s38
      %p42 = pneg %p36
      %p43 = scmp.eq.s32.totalorder %s27, 1
      %p44 = por %p42, %p43
      %p45 = scmp.ne.s32.totalorder %s37, %s40
      %p46 = scmp.eq.s32.totalorder %s27, 0
      %p47 = por %p45, %p46
      %p48 = scmp.ne.s32.totalorder %s37, %s40
      %p49 = scmp.eq.s32.totalorder %s32, 1
      %p50 = por %p48, %p49
      %p51 = scmp.ne.s32.totalorder %s40, %s41
      %p52 = scmp.eq.s32.totalorder %s32, 0
      %p53 = por %p51, %p52
      %p54 = scmp.ne.s32.totalorder %s40, %s41
      %p55 = scmp.eq.s32.totalorder %s33, 1
      %p56 = por %p54, %p55
      %p58 = scmp.ne.s32.totalorder %s41, %s57
      %p59 = scmp.eq.s32.totalorder %s33, 0
      %p60 = por %p58, %p59
      %s62 = sadd.s32 %s61, 1
      %p65 = scmp.eq.s32.totalorder %s27, 1
      %p66 = scmp.ne.s32.totalorder %s61, %s63
      %p67 = scmp.eq.s32.totalorder %s27, 0
      %p68 = por %p66, %p67
      %p69 = scmp.ne.s32.totalorder %s61, %s63
      %p70 = scmp.eq.s32.totalorder %s32, 1
      %p71 = por %p69, %p70
      %p72 = scmp.ne.s32.totalorder %s63, %s64
      %p73 = scmp.eq.s32.totalorder %s32, 0
      %p74 = por %p72, %p73
      %p75 = scmp.ne.s32.totalorder %s63, %s64
      %p76 = scmp.eq.s32.totalorder %s33, 1
      %p77 = por %p75, %p76
      %p79 = scmp.ne.s32.totalorder %s64, %s78
      %p80 = scmp.eq.s32.totalorder %s33, 0
      %p81 = por %p79, %p80
      %s83 = sadd.s32 %s82, 1
      %p86 = scmp.eq.s32.totalorder %s27, 1
      %p87 = scmp.ne.s32.totalorder %s82, %s84
      %p88 = scmp.eq.s32.totalorder %s27, 0
      %p89 = por %p87, %p88
      %p90 = scmp.ne.s32.totalorder %s82, %s84
      %p91 = scmp.eq.s32.totalorder %s32, 1
      %p92 = por %p90, %p91
      %p93 = scmp.ne.s32.totalorder %s84, %s85
      %p94 = scmp.eq.s32.totalorder %s32, 0
      %p95 = por %p93, %p94
      %p96 = scmp.ne.s32.totalorder %s84, %s85
      %p97 = scmp.eq.s32.totalorder %s33, 1
      %p98 = por %p96, %p97
      %p100 = scmp.ne.s32.totalorder %s85, %s99
      %p101 = scmp.eq.s32.totalorder %s33, 0
      %p102 = por %p100, %p101
      %s104 = sadd.s32 %s103, 1
      %p107 = scmp.eq.s32.totalorder %s27, 1
      %p108 = scmp.ne.s32.totalorder %s103, %s105
      %p109 = scmp.eq.s32.totalorder %s27, 0
      %p110 = por %p108, %p109
      %p111 = scmp.ne.s32.totalorder %s103, %s105
      %p112 = scmp.eq.s32.totalorder %s32, 1
      %p113 = por %p111, %p112
      %p114 = scmp.ne.s32.totalorder %s105, %s106
      %p115 = scmp.eq.s32.totalorder %s32, 0
      %p116 = por %p114, %p115
      %p117 = scmp.ne.s32.totalorder %s105, %s106
      %p118 = scmp.eq.s32.totalorder %s33, 1
      %p119 = por %p117, %p118
      %p121 = scmp.ne.s32.totalorder %s106, %s120
      %p122 = scmp.eq.s32.totalorder %s33, 0
      %p123 = por %p121, %p122
      %s125 = sadd.s32 %s124, 1
      %p128 = scmp.eq.s32.totalorder %s27, 1
      %p129 = scmp.ne.s32.totalorder %s124, %s126
      %p130 = scmp.eq.s32.totalorder %s27, 0
      %p131 = por %p129, %p130
      %p132 = scmp.ne.s32.totalorder %s124, %s126
      %p133 = scmp.eq.s32.totalorder %s32, 1
      %p134 = por %p132, %p133
      %p135 = scmp.ne.s32.totalorder %s126, %s127
      %p136 = scmp.eq.s32.totalorder %s32, 0
      %p137 = por %p135, %p136
      %p138 = scmp.ne.s32.totalorder %s126, %s127
      %p139 = scmp.eq.s32.totalorder %s33, 1
      %p140 = por %p138, %p139
      %p142 = scmp.ne.s32.totalorder %s127, %s141
      %p143 = scmp.eq.s32.totalorder %s33, 0
      %p144 = por %p142, %p143
      %s146 = sadd.s32 %s145, 1
      %p149 = scmp.eq.s32.totalorder %s27, 1
      %p150 = scmp.ne.s32.totalorder %s145, %s147
      %p151 = scmp.eq.s32.totalorder %s27, 0
      %p152 = por %p150, %p151
      %p153 = scmp.ne.s32.totalorder %s145, %s147
      %p154 = scmp.eq.s32.totalorder %s32, 1
      %p155 = por %p153, %p154
      %p156 = scmp.ne.s32.totalorder %s147, %s148
      %p157 = scmp.eq.s32.totalorder %s32, 0
      %p158 = por %p156, %p157
      %p159 = scmp.ne.s32.totalorder %s147, %s148
      %p160 = scmp.eq.s32.totalorder %s33, 1
      %p161 = por %p159, %p160
      %p163 = scmp.ne.s32.totalorder %s148, %s162
      %p164 = scmp.eq.s32.totalorder %s33, 0
      %p165 = por %p163, %p164
      %s167 = sadd.s32 %s166, 1
      %p170 = scmp.eq.s32.totalorder %s27, 1
      %p171 = scmp.ne.s32.totalorder %s166, %s168
      %p172 = scmp.eq.s32.totalorder %s27, 0
      %p173 = por %p171, %p172
      %p174 = scmp.ne.s32.totalorder %s166, %s168
      %p175 = scmp.eq.s32.totalorder %s32, 1
      %p176 = por %p174, %p175
      %p177 = scmp.ne.s32.totalorder %s168, %s169
      %p178 = scmp.eq.s32.totalorder %s32, 0
      %p179 = por %p177, %p178
      %p180 = scmp.ne.s32.totalorder %s168, %s169
      %p181 = scmp.eq.s32.totalorder %s33, 1
      %p182 = por %p180, %p181
      %p184 = scmp.ne.s32.totalorder %s169, %s183
      %p185 = scmp.eq.s32.totalorder %s33, 0
      %p186 = por %p184, %p185
      %s188 = sadd.s32 %s187, 1
      %p191 = scmp.eq.s32.totalorder %s27, 1
      %p192 = scmp.ne.s32.totalorder %s187, %s189
      %p193 = scmp.eq.s32.totalorder %s27, 0
      %p194 = por %p192, %p193
      %p195 = scmp.ne.s32.totalorder %s187, %s189
      %p196 = scmp.eq.s32.totalorder %s32, 1
      %p197 = por %p195, %p196
      %p198 = scmp.ne.s32.totalorder %s189, %s190
      %p199 = scmp.eq.s32.totalorder %s32, 0
      %p200 = por %p198, %p199
      %p201 = scmp.ne.s32.totalorder %s189, %s190
      %p202 = scmp.eq.s32.totalorder %s33, 1
      %p203 = por %p201, %p202
      %p205 = scmp.ne.s32.totalorder %s190, %s204
      %p206 = scmp.eq.s32.totalorder %s33, 0
      %p207 = por %p205, %p206
      %s209 = sadd.s32 %s208, 1
      %p212 = scmp.eq.s32.totalorder %s27, 1
      %p213 = scmp.ne.s32.totalorder %s208, %s210
      %p214 = scmp.eq.s32.totalorder %s27, 0
      %p215 = por %p213, %p214
      %p216 = scmp.ne.s32.totalorder %s208, %s210
      %p217 = scmp.eq.s32.totalorder %s32, 1
      %p218 = por %p216, %p217
      %p219 = scmp.ne.s32.totalorder %s210, %s211
      %p220 = scmp.eq.s32.totalorder %s32, 0
      %p221 = por %p219, %p220
      %p222 = scmp.ne.s32.totalorder %s210, %s211
      %p223 = scmp.eq.s32.totalorder %s33, 1
      %p224 = por %p222, %p223
      %p226 = scmp.ne.s32.totalorder %s211, %s225
      %p227 = scmp.eq.s32.totalorder %s33, 0
      %p228 = por %p226, %p227
      %s230 = sadd.s32 %s229, 1
      %p233 = scmp.eq.s32.totalorder %s27, 1
      %p234 = scmp.ne.s32.totalorder %s229, %s231
      %p235 = scmp.eq.s32.totalorder %s27, 0
      %p236 = por %p234, %p235
      %p237 = scmp.ne.s32.totalorder %s229, %s231
      %p238 = scmp.eq.s32.totalorder %s32, 1
      %p239 = por %p237, %p238
      %p240 = scmp.ne.s32.totalorder %s231, %s232
      %p241 = scmp.eq.s32.totalorder %s32, 0
      %p242 = por %p240, %p241
      %p243 = scmp.ne.s32.totalorder %s231, %s232
      %p244 = scmp.eq.s32.totalorder %s33, 1
      %p245 = por %p243, %p244
      %p247 = scmp.ne.s32.totalorder %s232, %s246
      %p248 = scmp.eq.s32.totalorder %s33, 0
      %p249 = por %p247, %p248
      %s250 = ssub.s32 %s27, %s34
      %p251 = scmp.eq.s32.totalorder %s250, 0
      %s253 = sadd.s32 %s252, 1
      %s254 = scalar_select %p251, %s252, %s253
      %p257 = pneg %p251
      %p258 = scmp.eq.s32.totalorder %s27, 1
      %p259 = por %p257, %p258
      %p260 = scmp.ne.s32.totalorder %s252, %s255
      %p261 = scmp.eq.s32.totalorder %s27, 0
      %p262 = por %p260, %p261
      %p263 = scmp.ne.s32.totalorder %s252, %s255
      %p264 = scmp.eq.s32.totalorder %s32, 1
      %p265 = por %p263, %p264
      %p266 = scmp.ne.s32.totalorder %s255, %s256
      %p267 = scmp.eq.s32.totalorder %s32, 0
      %p268 = por %p266, %p267
      %p269 = scmp.ne.s32.totalorder %s255, %s256
      %p270 = scmp.eq.s32.totalorder %s33, 1
      %p271 = por %p269, %p270
      %p273 = scmp.ne.s32.totalorder %s256, %s272
      %p274 = scmp.eq.s32.totalorder %s33, 0
      %p275 = por %p273, %p274
      %p276 = scmp.le.s32.totalorder 1, %s27
      %p277 = scmp.lt.s32.totalorder %s27, 3
      %p278 = pnand %p276, %p277
      %p279 = pneg %p278
      // Predicated region
      $region9: #{image_lstm_forward.1} parent=5 // pred_check
        _
      $region10: #{image_lstm_forward.1} parent=5 // pred_check_branch
        %281 = sbr.rel (%p278) target = $region12
      $region11: #{image_lstm_forward.1} parent=5 // pred_region
        %s282 = ssub.s32 %s27, 1
        // Predicated region
        $region13: #{image_lstm_forward.1} parent=11 // pred_check
          %p283 = pneg %p74
        $region14: #{image_lstm_forward.1} parent=11 // pred_check_branch
          %285 = sbr.rel (%p283) target = $region16
        $region15: #{image_lstm_forward.1} parent=11 // pred_region
          %s287 = ssub.s32 256, 256
          %288 = vsyncadd [#allocation8], %s287
          %s289 = sshll.u32 %s2, 4
          %s290 = int_to_ptr.vmem [resolvable:$true] %s289
          %295 = dma.vmem_to_smem %s290, 256, [#allocation7], [#allocation8], 128, 128, 8
        $region16: #{image_lstm_forward.1} parent=11 // pred_fallthru
          _
        // Predicated region
        $region17: #{image_lstm_forward.1} parent=11 // pred_check
          %p296 = pneg %p95
        $region18: #{image_lstm_forward.1} parent=11 // pred_check_branch
          %298 = sbr.rel (%p296) target = $region20
        $region19: #{image_lstm_forward.1} parent=11 // pred_region
          %s300 = ssub.s32 16, 16
          %301 = vsyncadd [#allocation10], %s300
          %s303 = sshll.u32 %s3, 4
          %s304 = int_to_ptr.vmem [resolvable:$true] %s303
          %306 = dma.vmem_to_smem %s304, 16, [#allocation9], [#allocation10]
        $region20: #{image_lstm_forward.1} parent=11 // pred_fallthru
          _
        // Predicated region
        $region21: #{image_lstm_forward.1} parent=11 // pred_check
          %p307 = pneg %p116
        $region22: #{image_lstm_forward.1} parent=11 // pred_check_branch
          %309 = sbr.rel (%p307) target = $region24
        $region23: #{image_lstm_forward.1} parent=11 // pred_region
          _
        $region24: #{image_lstm_forward.1} parent=11 // pred_fallthru
          _
        // Predicated region
        $region25: #{image_lstm_forward.1} parent=11 // pred_check
          %p310 = pneg %p137
        $region26: #{image_lstm_forward.1} parent=11 // pred_check_branch
          %312 = sbr.rel (%p310) target = $region28
        $region27: #{image_lstm_forward.1} parent=11 // pred_region
          _
        $region28: #{image_lstm_forward.1} parent=11 // pred_fallthru
          _
        // Predicated region
        $region29: #{image_lstm_forward.1} parent=11 // pred_check
          %p313 = pneg %p158
        $region30: #{image_lstm_forward.1} parent=11 // pred_check_branch
          %315 = sbr.rel (%p313) target = $region32
        $region31: #{image_lstm_forward.1} parent=11 // pred_region
          _
        $region32: #{image_lstm_forward.1} parent=11 // pred_fallthru
          _
        // Predicated region
        $region33: #{image_lstm_forward.1} parent=11 // pred_check
          %p316 = pneg %p179
        $region34: #{image_lstm_forward.1} parent=11 // pred_check_branch
          %318 = sbr.rel (%p316) target = $region36
        $region35: #{image_lstm_forward.1} parent=11 // pred_region
          _
        $region36: #{image_lstm_forward.1} parent=11 // pred_fallthru
          _
        // Predicated region
        $region37: #{image_lstm_forward.1} parent=11 // pred_check
          %p319 = pneg %p200
        $region38: #{image_lstm_forward.1} parent=11 // pred_check_branch
          %321 = sbr.rel (%p319) target = $region40
        $region39: #{image_lstm_forward.1} parent=11 // pred_region
          _
        $region40: #{image_lstm_forward.1} parent=11 // pred_fallthru
          _
        // Predicated region
        $region41: #{image_lstm_forward.1} parent=11 // pred_check
          %p322 = pneg %p221
        $region42: #{image_lstm_forward.1} parent=11 // pred_check_branch
          %324 = sbr.rel (%p322) target = $region44
        $region43: #{image_lstm_forward.1} parent=11 // pred_region
          _
        $region44: #{image_lstm_forward.1} parent=11 // pred_fallthru
          _
        // Predicated region
        $region45: #{image_lstm_forward.1} parent=11 // pred_check
          %p325 = pneg %p242
        $region46: #{image_lstm_forward.1} parent=11 // pred_check_branch
          %327 = sbr.rel (%p325) target = $region48
        $region47: #{image_lstm_forward.1} parent=11 // pred_region
          _
        $region48: #{image_lstm_forward.1} parent=11 // pred_fallthru
          _
      $region12: #{image_lstm_forward.1} parent=5 // pred_fallthru
        _
      %p328 = scmp.lt.s32.totalorder %s27, 2
      // Predicated region
      $region49: #{image_lstm_forward.1} parent=5 // pred_check
        %p329 = pneg %p328
      $region50: #{image_lstm_forward.1} parent=5 // pred_check_branch
        %331 = sbr.rel (%p329) target = $region52
      $region51: #{image_lstm_forward.1} parent=5 // pred_region
        // Predicated region
        $region53: #{image_lstm_forward.1} parent=51 // pred_check
          %p332 = pneg %p47
        $region54: #{image_lstm_forward.1} parent=51 // pred_check_branch
          %334 = sbr.rel (%p332) target = $region56
        $region55: #{image_lstm_forward.1} parent=51 // pred_region
          %s335 = sand.u32 %s37, 1
          %s336 = sand.u32 %s37, 1
          %s337 = smul.addr %s336, 144
          %s338 = scalar_lea.vmem [#allocation6], %s337
          %s339 = smul.addr %s27, 2
          %s340 = smul.addr %s339, 8
          %s341 = scalar_lea.vmem %s1, %s340
          // Predicated region
          $region57: #{image_lstm_forward.1} parent=55 // pred_check
            _
          $region58: #{image_lstm_forward.1} parent=55 // pred_check_branch
            %343 = sbr.rel (0) target = $region60
          $region59: #{image_lstm_forward.1} parent=55 // pred_region
            // Predicated region
            $region61: #{image_lstm_forward.1} parent=59 // pred_check
              _
            $region62: #{image_lstm_forward.1} parent=59 // pred_check_branch
              %345 = sbr.rel (0) target = $region64
            $region63: #{image_lstm_forward.1} parent=59 // pred_region
              loop: start=0, step=1, limit=1
              $region65: #{image_lstm_forward.1} parent=63 // loop_pre_header
                _
              $region66: #{image_lstm_forward.1} parent=63 // loop_header
                %s347 = sphi 0, %s351
                %p348 = scmp.ge.s32.totalorder %s347, 1
                %s352 = sphi %s341, %s341
                %s353 = sphi %s338, %s338
              $region67: #{image_lstm_forward.1} parent=63 // loop_header_branch
                %350 = sbr.rel (%p348) target = $region71
              $region68: #{image_lstm_forward.1} parent=63 // loop_body
                %v354 = vld [vmem:[%s352] sm:$0xff]
                %355 = vst [vmem:[%s353] sm:$0xff] %v354
                %v356 = vld [vmem:[%s352 + $0x8] sm:$0xff]
                %357 = vst [vmem:[%s353 + $0x8] sm:$0xff] %v356
                %v358 = vld [vmem:[%s352 + $0x20] sm:$0xff]
                %359 = vst [vmem:[%s353 + $0x10] sm:$0xff] %v358
                %v360 = vld [vmem:[%s352 + $0x28] sm:$0xff]
                %361 = vst [vmem:[%s353 + $0x18] sm:$0xff] %v360
                %v362 = vld [vmem:[%s352 + $0x40] sm:$0xff]
                %363 = vst [vmem:[%s353 + $0x20] sm:$0xff] %v362
                %v364 = vld [vmem:[%s352 + $0x48] sm:$0xff]
                %365 = vst [vmem:[%s353 + $0x28] sm:$0xff] %v364
                %v366 = vld [vmem:[%s352 + $0x60] sm:$0xff]
                %367 = vst [vmem:[%s353 + $0x30] sm:$0xff] %v366
                %v368 = vld [vmem:[%s352 + $0x68] sm:$0xff]
                %369 = vst [vmem:[%s353 + $0x38] sm:$0xff] %v368
                %v370 = vld [vmem:[%s352 + $0x80] sm:$0xff]
                %371 = vst [vmem:[%s353 + $0x40] sm:$0xff] %v370
                %v372 = vld [vmem:[%s352 + $0x88] sm:$0xff]
                %373 = vst [vmem:[%s353 + $0x48] sm:$0xff] %v372
                %v374 = vld [vmem:[%s352 + $0xa0] sm:$0xff]
                %375 = vst [vmem:[%s353 + $0x50] sm:$0xff] %v374
                %v376 = vld [vmem:[%s352 + $0xa8] sm:$0xff]
                %377 = vst [vmem:[%s353 + $0x58] sm:$0xff] %v376
                %v378 = vld [vmem:[%s352 + $0xc0] sm:$0xff]
                %379 = vst [vmem:[%s353 + $0x60] sm:$0xff] %v378
                %v380 = vld [vmem:[%s352 + $0xc8] sm:$0xff]
                %381 = vst [vmem:[%s353 + $0x68] sm:$0xff] %v380
                %v382 = vld [vmem:[%s352 + $0xe0] sm:$0xff]
                %383 = vst [vmem:[%s353 + $0x70] sm:$0xff] %v382
                %v384 = vld [vmem:[%s352 + $0xe8] sm:$0xff]
                %385 = vst [vmem:[%s353 + $0x78] sm:$0xff] %v384
                %v386 = vld [vmem:[%s352 + $0x100] sm:$0xff]
                %387 = vst [vmem:[%s353 + $0x80] sm:$0xff] %v386
                %v388 = vld [vmem:[%s352 + $0x108] sm:$0xff]
                %389 = vst [vmem:[%s353 + $0x88] sm:$0xff] %v388
              $region69: #{image_lstm_forward.1} parent=63 // loop_footer
                %s351 = sadd.s32 1, %s347
              $region70: #{image_lstm_forward.1} parent=63 // loop_footer_branch
                %346 = sbr.rel target = $region66
              $region71: #{image_lstm_forward.1} parent=63 // loop_exit
                _
            $region64: #{image_lstm_forward.1} parent=59 // pred_fallthru
              _
            // Predicated region
            $region72: #{image_lstm_forward.1} parent=59 // pred_check
              _
            $region73: #{image_lstm_forward.1} parent=59 // pred_check_branch
              %391 = sbr.rel target = $region75
            $region74: #{image_lstm_forward.1} parent=59 // pred_region
              _
            $region75: #{image_lstm_forward.1} parent=59 // pred_fallthru
              _
          $region60: #{image_lstm_forward.1} parent=55 // pred_fallthru
            _
          %392 = vnop
        $region56: #{image_lstm_forward.1} parent=51 // pred_fallthru
          _
      $region52: #{image_lstm_forward.1} parent=5 // pred_fallthru
        _
      %p393 = scmp.le.s32.totalorder 1, %s27
      %p394 = scmp.lt.s32.totalorder %s27, 3
      %p395 = pnand %p393, %p394
      %p396 = pneg %p395
      // Predicated region
      $region76: #{image_lstm_forward.1} parent=5 // pred_check
        _
      $region77: #{image_lstm_forward.1} parent=5 // pred_check_branch
        %398 = sbr.rel (%p395) target = $region79
      $region78: #{image_lstm_forward.1} parent=5 // pred_region
        %s399 = ssub.s32 %s27, 1
        %s400 = sand.u32 %s40, 1
        %s401 = sand.u32 %s40, 1
        %s402 = smul.addr %s401, 144
        %s403 = scalar_lea.vmem [#allocation6], %s402
        // Predicated region
        $region80: #{image_lstm_forward.1} parent=78 // pred_check
          %p404 = pneg %p53
        $region81: #{image_lstm_forward.1} parent=78 // pred_check_branch
          %406 = sbr.rel (%p404) target = $region83
        $region82: #{image_lstm_forward.1} parent=78 // pred_region
          _
        $region83: #{image_lstm_forward.1} parent=78 // pred_fallthru
          _
        // Predicated region
        $region84: #{image_lstm_forward.1} parent=78 // pred_check
          %p407 = pneg %p74
        $region85: #{image_lstm_forward.1} parent=78 // pred_check_branch
          %409 = sbr.rel (%p407) target = $region87
        $region86: #{image_lstm_forward.1} parent=78 // pred_region
          %410 = dma.done [#allocation8], 256
        $region87: #{image_lstm_forward.1} parent=78 // pred_fallthru
          _
        // Predicated region
        $region88: #{image_lstm_forward.1} parent=78 // pred_check
          %p411 = pneg %p95
        $region89: #{image_lstm_forward.1} parent=78 // pred_check_branch
          %413 = sbr.rel (%p411) target = $region91
        $region90: #{image_lstm_forward.1} parent=78 // pred_region
          %414 = dma.done [#allocation10], 16
        $region91: #{image_lstm_forward.1} parent=78 // pred_fallthru
          _
        %415 = sfence
        %s416 = sand.u32 %s40, 1
        %s417 = sand.u32 %s40, 1
        %s418 = smul.addr %s417, 144
        %s419 = scalar_lea.vmem [#allocation6], %s418
        %p420 = pneg %p53
        %p421 = pneg %p50
        %p422 = pneg %p74
        %p423 = pneg %p71
        %p424 = pneg %p95
        %p425 = pneg %p92
        %p426 = pneg %p116
        %p427 = pneg %p113
        %p428 = pneg %p137
        %p429 = pneg %p134
        %p430 = pneg %p158
        %p431 = pneg %p155
        %p432 = pneg %p179
        %p433 = pneg %p176
        %p434 = pneg %p200
        %p435 = pneg %p197
        %p436 = pneg %p221
        %p437 = pneg %p218
        %p438 = pneg %p242
        %p439 = pneg %p239
        %p440 = pneg %p268
        %p441 = pneg %p265
        %p442 = scmp.lt.s32.totalorder %s32, 1
        %s443 = scalar_select %p442, %s32, 1
        %s444 = scalar_lea.vmem %s11, %s443
        %p445 = scmp.lt.s32.totalorder %s32, 1
        %s446 = scalar_select %p445, %s32, 1
        %s447 = scalar_lea.vmem %s11, %s446
        %v448 = vld [vmem:[%s5] sm:$0x1]
        %v450 = vlaneseq
        %v451 = vshrl.u32 %v450, 7
        %v452 = vsub.s32 0, %v451
        %v453 = vrot.slane %v448, %v452
        %v455 = vadd.f32 %v453, 0.0
        %s456 = sld [smem:[#allocation9]]
        %v457 = vstv %s456
        %v458 = vadd.f32 %v457, 0.0
        %s459 = sld [smem:[#allocation7]]
        %v460 = vld [vmem:[%s403] sm:$0xff]
        %v461 = vld [vmem:[%s403 + $0x8] sm:$0xff]
        %v462 = vstv %s459
        %v463 = vmul.f32 %v462, %v460
        %v464 = vmul.f32 %v462, %v461
        %v465 = vadd.f32 %v458, %v463
        %v466 = vadd.f32 %v458, %v464
        %s467 = sld [smem:[#allocation7 + $0x80]]
        %s468 = scalar_lea.vmem %s403, 16 [#allocation6]
        %v469 = vld [vmem:[%s468] sm:$0xff]
        %v470 = vld [vmem:[%s468 + $0x8] sm:$0xff]
        %v471 = vstv %s467
        %v472 = vmul.f32 %v471, %v469
        %v473 = vmul.f32 %v471, %v470
        %v474 = vadd.f32 %v465, %v472
        %v475 = vadd.f32 %v466, %v473
        %s476 = sld [smem:[#allocation7 + $0x100]]
        %s477 = scalar_lea.vmem %s403, 32 [#allocation6]
        %v478 = vld [vmem:[%s477] sm:$0xff]
        %v479 = vld [vmem:[%s477 + $0x8] sm:$0xff]
        %v480 = vstv %s476
        %v481 = vmul.f32 %v480, %v478
        %v482 = vmul.f32 %v480, %v479
        %v483 = vadd.f32 %v474, %v481
        %v484 = vadd.f32 %v475, %v482
        %s485 = sld [smem:[#allocation7 + $0x180]]
        %s486 = scalar_lea.vmem %s403, 48 [#allocation6]
        %v487 = vld [vmem:[%s486] sm:$0xff]
        %v488 = vld [vmem:[%s486 + $0x8] sm:$0xff]
        %v489 = vstv %s485
        %v490 = vmul.f32 %v489, %v487
        %v491 = vmul.f32 %v489, %v488
        %v492 = vadd.f32 %v483, %v490
        %v493 = vadd.f32 %v484, %v491
        %s494 = sld [smem:[#allocation7 + $0x200]]
        %s495 = scalar_lea.vmem %s403, 64 [#allocation6]
        %v496 = vld [vmem:[%s495] sm:$0xff]
        %v497 = vld [vmem:[%s495 + $0x8] sm:$0xff]
        %v498 = vstv %s494
        %v499 = vmul.f32 %v498, %v496
        %v500 = vmul.f32 %v498, %v497
        %v501 = vadd.f32 %v492, %v499
        %v502 = vadd.f32 %v493, %v500
        %s503 = sld [smem:[#allocation7 + $0x280]]
        %s504 = scalar_lea.vmem %s403, 80 [#allocation6]
        %v505 = vld [vmem:[%s504] sm:$0xff]
        %v506 = vld [vmem:[%s504 + $0x8] sm:$0xff]
        %v507 = vstv %s503
        %v508 = vmul.f32 %v507, %v505
        %v509 = vmul.f32 %v507, %v506
        %v510 = vadd.f32 %v501, %v508
        %v511 = vadd.f32 %v502, %v509
        %s512 = sld [smem:[#allocation7 + $0x300]]
        %s513 = scalar_lea.vmem %s403, 96 [#allocation6]
        %v514 = vld [vmem:[%s513] sm:$0xff]
        %v515 = vld [vmem:[%s513 + $0x8] sm:$0xff]
        %v516 = vstv %s512
        %v517 = vmul.f32 %v516, %v514
        %v518 = vmul.f32 %v516, %v515
        %v519 = vadd.f32 %v510, %v517
        %v520 = vadd.f32 %v511, %v518
        %s521 = sld [smem:[#allocation7 + $0x380]]
        %s522 = scalar_lea.vmem %s403, 112 [#allocation6]
        %v523 = vld [vmem:[%s522] sm:$0xff]
        %v524 = vld [vmem:[%s522 + $0x8] sm:$0xff]
        %v525 = vstv %s521
        %v526 = vmul.f32 %v525, %v523
        %v527 = vmul.f32 %v525, %v524
        %v528 = vadd.f32 %v519, %v526
        %v529 = vadd.f32 %v520, %v527
        %s530 = sld [smem:[#allocation7 + $0x400]]
        %s531 = scalar_lea.vmem %s403, 128 [#allocation6]
        %v532 = vld [vmem:[%s531] sm:$0xff]
        %v533 = vld [vmem:[%s531 + $0x8] sm:$0xff]
        %v534 = vstv %s530
        %v535 = vmul.f32 %v534, %v532
        %v536 = vmul.f32 %v534, %v533
        %v537 = vadd.f32 %v528, %v535
        %v538 = vadd.f32 %v529, %v536
        %v539 = vmax.f32 %v537, 0.0
        %v540 = vmax.f32 %v538, 0.0
        %v541 = vld [vmem:[%s4] sm:$0xff]
        %v542 = vld [vmem:[%s4 + $0x8] sm:$0xff]
        %v543 = vld [vmem:[%s4 + $0x10] sm:$0xff]
        %v544 = vld [vmem:[%s4 + $0x18] sm:$0xff]
        %v545 = vld [vmem:[%s4 + $0x20] sm:$0xff]
        %v546 = vld [vmem:[%s4 + $0x28] sm:$0xff]
        %v547 = vld [vmem:[%s4 + $0x30] sm:$0xff]
        %v548 = vld [vmem:[%s4 + $0x38] sm:$0xff]
        %v549 = vld [vmem:[%s4 + $0x40] sm:$0xff]
        %v550 = vld [vmem:[%s4 + $0x48] sm:$0xff]
        %v551 = vld [vmem:[%s4 + $0x50] sm:$0xff]
        %v552 = vld [vmem:[%s4 + $0x58] sm:$0xff]
        %v553 = vld [vmem:[%s4 + $0x60] sm:$0xff]
        %v554 = vld [vmem:[%s4 + $0x68] sm:$0xff]
        %v555 = vld [vmem:[%s4 + $0x70] sm:$0xff]
        %v556 = vld [vmem:[%s4 + $0x78] sm:$0xff]
        %v557 = vld [vmem:[%s4 + $0x80] sm:$0xff]
        %v558 = vld [vmem:[%s4 + $0x88] sm:$0xff]
        %v559 = vld [vmem:[%s4 + $0x90] sm:$0xff]
        %v560 = vld [vmem:[%s4 + $0x98] sm:$0xff]
        %v561 = vld [vmem:[%s4 + $0xa0] sm:$0xff]
        %v562 = vld [vmem:[%s4 + $0xa8] sm:$0xff]
        %v563 = vld [vmem:[%s4 + $0xb0] sm:$0xff]
        %v564 = vld [vmem:[%s4 + $0xb8] sm:$0xff]
        %v565 = vld [vmem:[%s4 + $0xc0] sm:$0xff]
        %v566 = vld [vmem:[%s4 + $0xc8] sm:$0xff]
        %v567 = vld [vmem:[%s4 + $0xd0] sm:$0xff]
        %v568 = vld [vmem:[%s4 + $0xd8] sm:$0xff]
        %v569 = vld [vmem:[%s4 + $0xe0] sm:$0xff]
        %v570 = vld [vmem:[%s4 + $0xe8] sm:$0xff]
        %v571 = vld [vmem:[%s4 + $0xf0] sm:$0xff]
        %v572 = vld [vmem:[%s4 + $0xf8] sm:$0xff]
        %573 = vmatprep.subr.mxu0 0.0
        %574 = vmatpush1.msra.mxu0 %v541
        %575 = vmatprep.subr.mxu0 0.0
        %576 = vmatpush1.msra.mxu0 %v542
        %577 = vmatprep.subr.mxu0 0.0
        %578 = vmatpush1.msra.mxu0 %v543
        %579 = vmatprep.subr.mxu0 0.0
        %580 = vmatpush1.msra.mxu0 %v544
        %581 = vmatprep.subr.mxu0 0.0
        %582 = vmatpush1.msra.mxu0 %v545
        %583 = vmatprep.subr.mxu0 0.0
        %584 = vmatpush1.msra.mxu0 %v546
        %585 = vmatprep.subr.mxu0 0.0
        %586 = vmatpush1.msra.mxu0 %v547
        %587 = vmatprep.subr.mxu0 0.0
        %588 = vmatpush1.msra.mxu0 %v548
        %589 = vmatprep.subr.mxu0 0.0
        %590 = vmatpush1.msra.mxu0 %v549
        %591 = vmatprep.subr.mxu0 0.0
        %592 = vmatpush1.msra.mxu0 %v550
        %593 = vmatprep.subr.mxu0 0.0
        %594 = vmatpush1.msra.mxu0 %v551
        %595 = vmatprep.subr.mxu0 0.0
        %596 = vmatpush1.msra.mxu0 %v552
        %597 = vmatprep.subr.mxu0 0.0
        %598 = vmatpush1.msra.mxu0 %v553
        %599 = vmatprep.subr.mxu0 0.0
        %600 = vmatpush1.msra.mxu0 %v554
        %601 = vmatprep.subr.mxu0 0.0
        %602 = vmatpush1.msra.mxu0 %v555
        %603 = vmatprep.subr.mxu0 0.0
        %604 = vmatpush1.msra.mxu0 %v556
        %605 = vmatprep.subr.mxu0 0.0
        %606 = vmatpush1.msra.mxu0 %v557
        %607 = vmatprep.subr.mxu0 0.0
        %608 = vmatpush1.msra.mxu0 %v558
        %609 = vmatprep.subr.mxu0 0.0
        %610 = vmatpush1.msra.mxu0 %v559
        %611 = vmatprep.subr.mxu0 0.0
        %612 = vmatpush1.msra.mxu0 %v560
        %613 = vmatprep.subr.mxu0 0.0
        %614 = vmatpush1.msra.mxu0 %v561
        %615 = vmatprep.subr.mxu0 0.0
        %616 = vmatpush1.msra.mxu0 %v562
        %617 = vmatprep.subr.mxu0 0.0
        %618 = vmatpush1.msra.mxu0 %v563
        %619 = vmatprep.subr.mxu0 0.0
        %620 = vmatpush1.msra.mxu0 %v564
        %621 = vmatprep.subr.mxu0 0.0
        %622 = vmatpush1.msra.mxu0 %v565
        %623 = vmatprep.subr.mxu0 0.0
        %624 = vmatpush1.msra.mxu0 %v566
        %625 = vmatprep.subr.mxu0 0.0
        %626 = vmatpush1.msra.mxu0 %v567
        %627 = vmatprep.subr.mxu0 0.0
        %628 = vmatpush1.msra.mxu0 %v568
        %629 = vmatprep.subr.mxu0 0.0
        %630 = vmatpush1.msra.mxu0 %v569
        %631 = vmatprep.subr.mxu0 0.0
        %632 = vmatpush1.msra.mxu0 %v570
        %633 = vmatprep.subr.mxu0 0.0
        %634 = vmatpush1.msra.mxu0 %v571
        %635 = vmatprep.subr.mxu0 0.0
        %636 = vmatpush1.msra.mxu0 %v572
        %637 = vmatprep.mubr.f32.mxu0 %v540
        %638 = vmatmul.mubr.f32.gmra.mrb[0].mxu0 %v539
        %v639 = vpop.f32.mrb[0].mxu0
        %v640 = vadd.f32 0.0, %v639
        %v641 = vpop.f32.mrb[0].mxu0
        %642 = vdwg.mxu0
        %v643 = vadd.f32 %v455, %v640
        %s644 = sld [smem:[#allocation9 + $0x1]]
        %v645 = vstv %s644
        %v646 = vadd.f32 %v645, 0.0
        %s647 = sld [smem:[#allocation7 + $0x1]]
        %v648 = vstv %s647
        %v649 = vmul.f32 %v648, %v460
        %v650 = vmul.f32 %v648, %v461
        %v651 = vadd.f32 %v646, %v649
        %v652 = vadd.f32 %v646, %v650
        %s653 = sld [smem:[#allocation7 + $0x81]]
        %v654 = vstv %s653
        %v655 = vmul.f32 %v654, %v469
        %v656 = vmul.f32 %v654, %v470
        %v657 = vadd.f32 %v651, %v655
        %v658 = vadd.f32 %v652, %v656
        %s659 = sld [smem:[#allocation7 + $0x101]]
        %v660 = vstv %s659
        %v661 = vmul.f32 %v660, %v478
        %v662 = vmul.f32 %v660, %v479
        %v663 = vadd.f32 %v657, %v661
        %v664 = vadd.f32 %v658, %v662
        %s665 = sld [smem:[#allocation7 + $0x181]]
        %v666 = vstv %s665
        %v667 = vmul.f32 %v666, %v487
        %v668 = vmul.f32 %v666, %v488
        %v669 = vadd.f32 %v663, %v667
        %v670 = vadd.f32 %v664, %v668
        %s671 = sld [smem:[#allocation7 + $0x201]]
        %v672 = vstv %s671
        %v673 = vmul.f32 %v672, %v496
        %v674 = vmul.f32 %v672, %v497
        %v675 = vadd.f32 %v669, %v673
        %v676 = vadd.f32 %v670, %v674
        %s677 = sld [smem:[#allocation7 + $0x281]]
        %v678 = vstv %s677
        %v679 = vmul.f32 %v678, %v505
        %v680 = vmul.f32 %v678, %v506
        %v681 = vadd.f32 %v675, %v679
        %v682 = vadd.f32 %v676, %v680
        %s683 = sld [smem:[#allocation7 + $0x301]]
        %v684 = vstv %s683
        %v685 = vmul.f32 %v684, %v514
        %v686 = vmul.f32 %v684, %v515
        %v687 = vadd.f32 %v681, %v685
        %v688 = vadd.f32 %v682, %v686
        %s689 = sld [smem:[#allocation7 + $0x381]]
        %v690 = vstv %s689
        %v691 = vmul.f32 %v690, %v523
        %v692 = vmul.f32 %v690, %v524
        %v693 = vadd.f32 %v687, %v691
        %v694 = vadd.f32 %v688, %v692
        %s695 = sld [smem:[#allocation7 + $0x401]]
        %v696 = vstv %s695
        %v697 = vmul.f32 %v696, %v532
        %v698 = vmul.f32 %v696, %v533
        %v699 = vadd.f32 %v693, %v697
        %v700 = vadd.f32 %v694, %v698
        %v701 = vmax.f32 %v699, 0.0
        %v702 = vmax.f32 %v700, 0.0
        %s703 = scalar_lea.vmem %s4, 256
        %v704 = vld [vmem:[%s703] sm:$0xff]
        %v705 = vld [vmem:[%s703 + $0x8] sm:$0xff]
        %v706 = vld [vmem:[%s703 + $0x10] sm:$0xff]
        %v707 = vld [vmem:[%s703 + $0x18] sm:$0xff]
        %v708 = vld [vmem:[%s703 + $0x20] sm:$0xff]
        %v709 = vld [vmem:[%s703 + $0x28] sm:$0xff]
        %v710 = vld [vmem:[%s703 + $0x30] sm:$0xff]
        %v711 = vld [vmem:[%s703 + $0x38] sm:$0xff]
        %v712 = vld [vmem:[%s703 + $0x40] sm:$0xff]
        %v713 = vld [vmem:[%s703 + $0x48] sm:$0xff]
        %v714 = vld [vmem:[%s703 + $0x50] sm:$0xff]
        %v715 = vld [vmem:[%s703 + $0x58] sm:$0xff]
        %v716 = vld [vmem:[%s703 + $0x60] sm:$0xff]
        %v717 = vld [vmem:[%s703 + $0x68] sm:$0xff]
        %v718 = vld [vmem:[%s703 + $0x70] sm:$0xff]
        %v719 = vld [vmem:[%s703 + $0x78] sm:$0xff]
        %v720 = vld [vmem:[%s703 + $0x80] sm:$0xff]
        %v721 = vld [vmem:[%s703 + $0x88] sm:$0xff]
        %v722 = vld [vmem:[%s703 + $0x90] sm:$0xff]
        %v723 = vld [vmem:[%s703 + $0x98] sm:$0xff]
        %v724 = vld [vmem:[%s703 + $0xa0] sm:$0xff]
        %v725 = vld [vmem:[%s703 + $0xa8] sm:$0xff]
        %v726 = vld [vmem:[%s703 + $0xb0] sm:$0xff]
        %v727 = vld [vmem:[%s703 + $0xb8] sm:$0xff]
        %v728 = vld [vmem:[%s703 + $0xc0] sm:$0xff]
        %v729 = vld [vmem:[%s703 + $0xc8] sm:$0xff]
        %v730 = vld [vmem:[%s703 + $0xd0] sm:$0xff]
        %v731 = vld [vmem:[%s703 + $0xd8] sm:$0xff]
        %v732 = vld [vmem:[%s703 + $0xe0] sm:$0xff]
        %v733 = vld [vmem:[%s703 + $0xe8] sm:$0xff]
        %v734 = vld [vmem:[%s703 + $0xf0] sm:$0xff]
        %v735 = vld [vmem:[%s703 + $0xf8] sm:$0xff]
        %736 = vmatprep.subr.mxu0 0.0
        %737 = vmatpush1.msra.mxu0 %v704
        %738 = vmatprep.subr.mxu0 0.0
        %739 = vmatpush1.msra.mxu0 %v705
        %740 = vmatprep.subr.mxu0 0.0
        %741 = vmatpush1.msra.mxu0 %v706
        %742 = vmatprep.subr.mxu0 0.0
        %743 = vmatpush1.msra.mxu0 %v707
        %744 = vmatprep.subr.mxu0 0.0
        %745 = vmatpush1.msra.mxu0 %v708
        %746 = vmatprep.subr.mxu0 0.0
        %747 = vmatpush1.msra.mxu0 %v709
        %748 = vmatprep.subr.mxu0 0.0
        %749 = vmatpush1.msra.mxu0 %v710
        %750 = vmatprep.subr.mxu0 0.0
        %751 = vmatpush1.msra.mxu0 %v711
        %752 = vmatprep.subr.mxu0 0.0
        %753 = vmatpush1.msra.mxu0 %v712
        %754 = vmatprep.subr.mxu0 0.0
        %755 = vmatpush1.msra.mxu0 %v713
        %756 = vmatprep.subr.mxu0 0.0
        %757 = vmatpush1.msra.mxu0 %v714
        %758 = vmatprep.subr.mxu0 0.0
        %759 = vmatpush1.msra.mxu0 %v715
        %760 = vmatprep.subr.mxu0 0.0
        %761 = vmatpush1.msra.mxu0 %v716
        %762 = vmatprep.subr.mxu0 0.0
        %763 = vmatpush1.msra.mxu0 %v717
        %764 = vmatprep.subr.mxu0 0.0
        %765 = vmatpush1.msra.mxu0 %v718
        %766 = vmatprep.subr.mxu0 0.0
        %767 = vmatpush1.msra.mxu0 %v719
        %768 = vmatprep.subr.mxu0 0.0
        %769 = vmatpush1.msra.mxu0 %v720
        %770 = vmatprep.subr.mxu0 0.0
        %771 = vmatpush1.msra.mxu0 %v721
        %772 = vmatprep.subr.mxu0 0.0
        %773 = vmatpush1.msra.mxu0 %v722
        %774 = vmatprep.subr.mxu0 0.0
        %775 = vmatpush1.msra.mxu0 %v723
        %776 = vmatprep.subr.mxu0 0.0
        %777 = vmatpush1.msra.mxu0 %v724
        %778 = vmatprep.subr.mxu0 0.0
        %779 = vmatpush1.msra.mxu0 %v725
        %780 = vmatprep.subr.mxu0 0.0
        %781 = vmatpush1.msra.mxu0 %v726
        %782 = vmatprep.subr.mxu0 0.0
        %783 = vmatpush1.msra.mxu0 %v727
        %784 = vmatprep.subr.mxu0 0.0
        %785 = vmatpush1.msra.mxu0 %v728
        %786 = vmatprep.subr.mxu0 0.0
        %787 = vmatpush1.msra.mxu0 %v729
        %788 = vmatprep.subr.mxu0 0.0
        %789 = vmatpush1.msra.mxu0 %v730
        %790 = vmatprep.subr.mxu0 0.0
        %791 = vmatpush1.msra.mxu0 %v731
        %792 = vmatprep.subr.mxu0 0.0
        %793 = vmatpush1.msra.mxu0 %v732
        %794 = vmatprep.subr.mxu0 0.0
        %795 = vmatpush1.msra.mxu0 %v733
        %796 = vmatprep.subr.mxu0 0.0
        %797 = vmatpush1.msra.mxu0 %v734
        %798 = vmatprep.subr.mxu0 0.0
        %799 = vmatpush1.msra.mxu0 %v735
        %800 = vmatprep.mubr.f32.mxu0 %v702
        %801 = vmatmul.mubr.f32.gmra.mrb[0].mxu0 %v701
        %v802 = vpop.f32.mrb[0].mxu0
        %v803 = vadd.f32 0.0, %v802
        %v804 = vpop.f32.mrb[0].mxu0
        %805 = vdwg.mxu0
        %v806 = vadd.f32 %v643, %v803
        %s807 = sld [smem:[#allocation9 + $0x2]]
        %v808 = vstv %s807
        %v809 = vadd.f32 %v808, 0.0
        %s810 = sld [smem:[#allocation7 + $0x2]]
        %v811 = vstv %s810
        %v812 = vmul.f32 %v811, %v460
        %v813 = vmul.f32 %v811, %v461
        %v814 = vadd.f32 %v809, %v812
        %v815 = vadd.f32 %v809, %v813
        %s816 = sld [smem:[#allocation7 + $0x82]]
        %v817 = vstv %s816
        %v818 = vmul.f32 %v817, %v469
        %v819 = vmul.f32 %v817, %v470
        %v820 = vadd.f32 %v814, %v818
        %v821 = vadd.f32 %v815, %v819
        %s822 = sld [smem:[#allocation7 + $0x102]]
        %v823 = vstv %s822
        %v824 = vmul.f32 %v823, %v478
        %v825 = vmul.f32 %v823, %v479
        %v826 = vadd.f32 %v820, %v824
        %v827 = vadd.f32 %v821, %v825
        %s828 = sld [smem:[#allocation7 + $0x182]]
        %v829 = vstv %s828
        %v830 = vmul.f32 %v829, %v487
        %v831 = vmul.f32 %v829, %v488
        %v832 = vadd.f32 %v826, %v830
        %v833 = vadd.f32 %v827, %v831
        %s834 = sld [smem:[#allocation7 + $0x202]]
        %v835 = vstv %s834
        %v836 = vmul.f32 %v835, %v496
        %v837 = vmul.f32 %v835, %v497
        %v838 = vadd.f32 %v832, %v836
        %v839 = vadd.f32 %v833, %v837
        %s840 = sld [smem:[#allocation7 + $0x282]]
        %v841 = vstv %s840
        %v842 = vmul.f32 %v841, %v505
        %v843 = vmul.f32 %v841, %v506
        %v844 = vadd.f32 %v838, %v842
        %v845 = vadd.f32 %v839, %v843
        %s846 = sld [smem:[#allocation7 + $0x302]]
        %v847 = vstv %s846
        %v848 = vmul.f32 %v847, %v514
        %v849 = vmul.f32 %v847, %v515
        %v850 = vadd.f32 %v844, %v848
        %v851 = vadd.f32 %v845, %v849
        %s852 = sld [smem:[#allocation7 + $0x382]]
        %v853 = vstv %s852
        %v854 = vmul.f32 %v853, %v523
        %v855 = vmul.f32 %v853, %v524
        %v856 = vadd.f32 %v850, %v854
        %v857 = vadd.f32 %v851, %v855
        %s858 = sld [smem:[#allocation7 + $0x402]]
        %v859 = vstv %s858
        %v860 = vmul.f32 %v859, %v532
        %v861 = vmul.f32 %v859, %v533
        %v862 = vadd.f32 %v856, %v860
        %v863 = vadd.f32 %v857, %v861
        %v864 = vmax.f32 %v862, 0.0
        %v865 = vmax.f32 %v863, 0.0
        %s866 = scalar_lea.vmem %s4, 512
        %v867 = vld [vmem:[%s866] sm:$0xff]
        %v868 = vld [vmem:[%s866 + $0x8] sm:$0xff]
        %v869 = vld [vmem:[%s866 + $0x10] sm:$0xff]
        %v870 = vld [vmem:[%s866 + $0x18] sm:$0xff]
        %v871 = vld [vmem:[%s866 + $0x20] sm:$0xff]
        %v872 = vld [vmem:[%s866 + $0x28] sm:$0xff]
        %v873 = vld [vmem:[%s866 + $0x30] sm:$0xff]
        %v874 = vld [vmem:[%s866 + $0x38] sm:$0xff]
        %v875 = vld [vmem:[%s866 + $0x40] sm:$0xff]
        %v876 = vld [vmem:[%s866 + $0x48] sm:$0xff]
        %v877 = vld [vmem:[%s866 + $0x50] sm:$0xff]
        %v878 = vld [vmem:[%s866 + $0x58] sm:$0xff]
        %v879 = vld [vmem:[%s866 + $0x60] sm:$0xff]
        %v880 = vld [vmem:[%s866 + $0x68] sm:$0xff]
        %v881 = vld [vmem:[%s866 + $0x70] sm:$0xff]
        %v882 = vld [vmem:[%s866 + $0x78] sm:$0xff]
        %v883 = vld [vmem:[%s866 + $0x80] sm:$0xff]
        %v884 = vld [vmem:[%s866 + $0x88] sm:$0xff]
        %v885 = vld [vmem:[%s866 + $0x90] sm:$0xff]
        %v886 = vld [vmem:[%s866 + $0x98] sm:$0xff]
        %v887 = vld [vmem:[%s866 + $0xa0] sm:$0xff]
        %v888 = vld [vmem:[%s866 + $0xa8] sm:$0xff]
        %v889 = vld [vmem:[%s866 + $0xb0] sm:$0xff]
        %v890 = vld [vmem:[%s866 + $0xb8] sm:$0xff]
        %v891 = vld [vmem:[%s866 + $0xc0] sm:$0xff]
        %v892 = vld [vmem:[%s866 + $0xc8] sm:$0xff]
        %v893 = vld [vmem:[%s866 + $0xd0] sm:$0xff]
        %v894 = vld [vmem:[%s866 + $0xd8] sm:$0xff]
        %v895 = vld [vmem:[%s866 + $0xe0] sm:$0xff]
        %v896 = vld [vmem:[%s866 + $0xe8] sm:$0xff]
        %v897 = vld [vmem:[%s866 + $0xf0] sm:$0xff]
        %v898 = vld [vmem:[%s866 + $0xf8] sm:$0xff]
        %899 = vmatprep.subr.mxu0 0.0
        %900 = vmatpush1.msra.mxu0 %v867
        %901 = vmatprep.subr.mxu0 0.0
        %902 = vmatpush1.msra.mxu0 %v868
        %903 = vmatprep.subr.mxu0 0.0
        %904 = vmatpush1.msra.mxu0 %v869
        %905 = vmatprep.subr.mxu0 0.0
        %906 = vmatpush1.msra.mxu0 %v870
        %907 = vmatprep.subr.mxu0 0.0
        %908 = vmatpush1.msra.mxu0 %v871
        %909 = vmatprep.subr.mxu0 0.0
        %910 = vmatpush1.msra.mxu0 %v872
        %911 = vmatprep.subr.mxu0 0.0
        %912 = vmatpush1.msra.mxu0 %v873
        %913 = vmatprep.subr.mxu0 0.0
        %914 = vmatpush1.msra.mxu0 %v874
        %915 = vmatprep.subr.mxu0 0.0
        %916 = vmatpush1.msra.mxu0 %v875
        %917 = vmatprep.subr.mxu0 0.0
        %918 = vmatpush1.msra.mxu0 %v876
        %919 = vmatprep.subr.mxu0 0.0
        %920 = vmatpush1.msra.mxu0 %v877
        %921 = vmatprep.subr.mxu0 0.0
        %922 = vmatpush1.msra.mxu0 %v878
        %923 = vmatprep.subr.mxu0 0.0
        %924 = vmatpush1.msra.mxu0 %v879
        %925 = vmatprep.subr.mxu0 0.0
        %926 = vmatpush1.msra.mxu0 %v880
        %927 = vmatprep.subr.mxu0 0.0
        %928 = vmatpush1.msra.mxu0 %v881
        %929 = vmatprep.subr.mxu0 0.0
        %930 = vmatpush1.msra.mxu0 %v882
        %931 = vmatprep.subr.mxu0 0.0
        %932 = vmatpush1.msra.mxu0 %v883
        %933 = vmatprep.subr.mxu0 0.0
        %934 = vmatpush1.msra.mxu0 %v884
        %935 = vmatprep.subr.mxu0 0.0
        %936 = vmatpush1.msra.mxu0 %v885
        %937 = vmatprep.subr.mxu0 0.0
        %938 = vmatpush1.msra.mxu0 %v886
        %939 = vmatprep.subr.mxu0 0.0
        %940 = vmatpush1.msra.mxu0 %v887
        %941 = vmatprep.subr.mxu0 0.0
        %942 = vmatpush1.msra.mxu0 %v888
        %943 = vmatprep.subr.mxu0 0.0
        %944 = vmatpush1.msra.mxu0 %v889
        %945 = vmatprep.subr.mxu0 0.0
        %946 = vmatpush1.msra.mxu0 %v890
        %947 = vmatprep.subr.mxu0 0.0
        %948 = vmatpush1.msra.mxu0 %v891
        %949 = vmatprep.subr.mxu0 0.0
        %950 = vmatpush1.msra.mxu0 %v892
        %951 = vmatprep.subr.mxu0 0.0
        %952 = vmatpush1.msra.mxu0 %v893
        %953 = vmatprep.subr.mxu0 0.0
        %954 = vmatpush1.msra.mxu0 %v894
        %955 = vmatprep.subr.mxu0 0.0
        %956 = vmatpush1.msra.mxu0 %v895
        %957 = vmatprep.subr.mxu0 0.0
        %958 = vmatpush1.msra.mxu0 %v896
        %959 = vmatprep.subr.mxu0 0.0
        %960 = vmatpush1.msra.mxu0 %v897
        %961 = vmatprep.subr.mxu0 0.0
        %962 = vmatpush1.msra.mxu0 %v898
        %963 = vmatprep.mubr.f32.mxu0 %v865
        %964 = vmatmul.mubr.f32.gmra.mrb[0].mxu0 %v864
        %v965 = vpop.f32.mrb[0].mxu0
        %v966 = vadd.f32 0.0, %v965
        %v967 = vpop.f32.mrb[0].mxu0
        %968 = vdwg.mxu0
        %v969 = vadd.f32 %v806, %v966
        %970 = vst [vmem:[#allocation2] sm:$0xff] %v969
        %s971 = sld [smem:[#allocation4 + %s32]]
        %v972 = vld [vmem:[#allocation2] sm:$0x1]
        %v973 = vld [vmem:[%s6] sm:$0xff]
        %v974 = vld [vmem:[%s6 + $0x8] sm:$0xff]
        %v975 = vld [vmem:[%s6 + $0x10] sm:$0xff]
        %v976 = vld [vmem:[%s6 + $0x18] sm:$0xff]
        %vm977 = vcmask 261120
        %v979 = vsel %vm977, 0.0, 0
        %981 = vmatprep.subr.mxu0 0.0
        %982 = vmatpush1.msra.mxu0 %v973
        %983 = vmatprep.subr.mxu0 0.0
        %984 = vmatpush1.msra.mxu0 %v974
        %985 = vmatprep.subr.mxu0 0.0
        %986 = vmatpush1.msra.mxu0 %v975
        %987 = vmatprep.subr.mxu0 0.0
        %988 = vmatpush1.msra.mxu0 %v976
        %989 = vmatprep.subr.mxu0 0.0
        %990 = vmatpush1.msra.mxu0 0.0
        %991 = vmatprep.subr.mxu0 0.0
        %992 = vmatpush1.msra.mxu0 0.0
        %993 = vmatprep.subr.mxu0 0.0
        %994 = vmatpush1.msra.mxu0 0.0
        %995 = vmatprep.subr.mxu0 0.0
        %996 = vmatpush1.msra.mxu0 0.0
        %997 = vmatprep.subr.mxu0 0.0
        %998 = vmatpush1.msra.mxu0 0.0
        %999 = vmatprep.subr.mxu0 0.0
        %1000 = vmatpush1.msra.mxu0 0.0
        %1001 = vmatprep.subr.mxu0 0.0
        %1002 = vmatpush1.msra.mxu0 0.0
        %1003 = vmatprep.subr.mxu0 0.0
        %1004 = vmatpush1.msra.mxu0 0.0
        %1005 = vmatprep.subr.mxu0 0.0
        %1006 = vmatpush1.msra.mxu0 0.0
        %1007 = vmatprep.subr.mxu0 0.0
        %1008 = vmatpush1.msra.mxu0 0.0
        %1009 = vmatprep.subr.mxu0 0.0
        %1010 = vmatpush1.msra.mxu0 0.0
        %1011 = vmatprep.subr.mxu0 0.0
        %1012 = vmatpush1.msra.mxu0 0.0
        %1013 = vmatprep.subr.mxu0 0.0
        %1014 = vmatpush1.msra.mxu0 0.0
        %1015 = vmatprep.subr.mxu0 0.0
        %1016 = vmatpush1.msra.mxu0 0.0
        %1017 = vmatprep.subr.mxu0 0.0
        %1018 = vmatpush1.msra.mxu0 0.0
        %1019 = vmatprep.subr.mxu0 0.0
        %1020 = vmatpush1.msra.mxu0 0.0
        %1021 = vmatprep.subr.mxu0 0.0
        %1022 = vmatpush1.msra.mxu0 0.0
        %1023 = vmatprep.subr.mxu0 0.0
        %1024 = vmatpush1.msra.mxu0 0.0
        %1025 = vmatprep.subr.mxu0 0.0
        %1026 = vmatpush1.msra.mxu0 0.0
        %1027 = vmatprep.subr.mxu0 0.0
        %1028 = vmatpush1.msra.mxu0 0.0
        %1029 = vmatprep.subr.mxu0 0.0
        %1030 = vmatpush1.msra.mxu0 0.0
        %1031 = vmatprep.subr.mxu0 0.0
        %1032 = vmatpush1.msra.mxu0 0.0
        %1033 = vmatprep.subr.mxu0 0.0
        %1034 = vmatpush1.msra.mxu0 0.0
        %1035 = vmatprep.subr.mxu0 0.0
        %1036 = vmatpush1.msra.mxu0 0.0
        %1037 = vmatprep.subr.mxu0 0.0
        %1038 = vmatpush1.msra.mxu0 0.0
        %1039 = vmatprep.subr.mxu0 0.0
        %1040 = vmatpush1.msra.mxu0 0.0
        %1041 = vmatprep.subr.mxu0 0.0
        %1042 = vmatpush1.msra.mxu0 0.0
        %1043 = vmatprep.subr.mxu0 0.0
        %1044 = vmatpush1.msra.mxu0 0.0
        %1045 = vmatprep.mubr.f32.mxu0 0.0
        %1046 = vmatmul.mubr.f32.gmra.mrb[0].mxu0 %v979
        %v1047 = vpop.f32.mrb[0].mxu0
        %v1048 = vadd.f32 0.0, %v1047
        %v1049 = vpop.f32.mrb[0].mxu0
        %1050 = vdwg.mxu0
        %v1051 = vadd.f32 %v972, %v1048
        %v1052 = vxor.u32 %v1051, 2147483648
        %v1053 = vmul.f32 %v1052, 1.442695
        %v1054 = vpow.pop %v1053
        %v1055 = vadd.f32 %v1054, 1.0
        %v1056 = vrcp.pop %v1055
        %v1057 = vmul.f32 1.0, %v1056
        %v1058 = vtanh.pop %v1051
        %v1059 = vmul.f32 %v1057, 0.0
        %1061 = vrot.lane.b32.xlu0 %v1058, 64
        %v1062 = vpop.permute.xlu0 %1061
        %v1064 = vmul.f32 %v1057, %v1062
        %1066 = vrot.lane.b32.xlu0 %v1064, 32
        %v1067 = vpop.permute.xlu0 %1066
        %v1069 = vadd.f32 %v1059, %v1067
        %v1070 = vtanh.pop %v1069
        %1072 = vrot.lane.b32.xlu0 %v1070, 64
        %v1073 = vpop.permute.xlu0 %1072
        %v1075 = vmul.f32 %v1057, %v1073
        %s1076 = ssub.s32 %s971, 1
        %p1077 = scmp.eq.s32.totalorder %s1076, 0
        %s1078 = scalar_select %p1077, 1, 0
        %v1079 = vstv %s1078
        %vm1080 = vcmp.eq.s32.totalorder %v1079, 1
        %v1081 = vsel %vm1080, %v1075, 0.0
        %v1082 = vld [vmem:[#allocation2 + $0x1] sm:$0x1]
        %1084 = vrot.lane.b32.xlu0 %v1075, 32
        %v1085 = vpop.permute.xlu0 %1084
        %v1086 = vsel %vm977, %v1085, 0
        %1088 = vmatprep.subr.mxu0 0.0
        %1089 = vmatpush1.msra.mxu0 %v973
        %1090 = vmatprep.subr.mxu0 0.0
        %1091 = vmatpush1.msra.mxu0 %v974
        %1092 = vmatprep.subr.mxu0 0.0
        %1093 = vmatpush1.msra.mxu0 %v975
        %1094 = vmatprep.subr.mxu0 0.0
        %1095 = vmatpush1.msra.mxu0 %v976
        %1096 = vmatprep.subr.mxu0 0.0
        %1097 = vmatpush1.msra.mxu0 0.0
        %1098 = vmatprep.subr.mxu0 0.0
        %1099 = vmatpush1.msra.mxu0 0.0
        %1100 = vmatprep.subr.mxu0 0.0
        %1101 = vmatpush1.msra.mxu0 0.0
        %1102 = vmatprep.subr.mxu0 0.0
        %1103 = vmatpush1.msra.mxu0 0.0
        %1104 = vmatprep.subr.mxu0 0.0
        %1105 = vmatpush1.msra.mxu0 0.0
        %1106 = vmatprep.subr.mxu0 0.0
        %1107 = vmatpush1.msra.mxu0 0.0
        %1108 = vmatprep.subr.mxu0 0.0
        %1109 = vmatpush1.msra.mxu0 0.0
        %1110 = vmatprep.subr.mxu0 0.0
        %1111 = vmatpush1.msra.mxu0 0.0
        %1112 = vmatprep.subr.mxu0 0.0
        %1113 = vmatpush1.msra.mxu0 0.0
        %1114 = vmatprep.subr.mxu0 0.0
        %1115 = vmatpush1.msra.mxu0 0.0
        %1116 = vmatprep.subr.mxu0 0.0
        %1117 = vmatpush1.msra.mxu0 0.0
        %1118 = vmatprep.subr.mxu0 0.0
        %1119 = vmatpush1.msra.mxu0 0.0
        %1120 = vmatprep.subr.mxu0 0.0
        %1121 = vmatpush1.msra.mxu0 0.0
        %1122 = vmatprep.subr.mxu0 0.0
        %1123 = vmatpush1.msra.mxu0 0.0
        %1124 = vmatprep.subr.mxu0 0.0
        %1125 = vmatpush1.msra.mxu0 0.0
        %1126 = vmatprep.subr.mxu0 0.0
        %1127 = vmatpush1.msra.mxu0 0.0
        %1128 = vmatprep.subr.mxu0 0.0
        %1129 = vmatpush1.msra.mxu0 0.0
        %1130 = vmatprep.subr.mxu0 0.0
        %1131 = vmatpush1.msra.mxu0 0.0
        %1132 = vmatprep.subr.mxu0 0.0
        %1133 = vmatpush1.msra.mxu0 0.0
        %1134 = vmatprep.subr.mxu0 0.0
        %1135 = vmatpush1.msra.mxu0 0.0
        %1136 = vmatprep.subr.mxu0 0.0
        %1137 = vmatpush1.msra.mxu0 0.0
        %1138 = vmatprep.subr.mxu0 0.0
        %1139 = vmatpush1.msra.mxu0 0.0
        %1140 = vmatprep.subr.mxu0 0.0
        %1141 = vmatpush1.msra.mxu0 0.0
        %1142 = vmatprep.subr.mxu0 0.0
        %1143 = vmatpush1.msra.mxu0 0.0
        %1144 = vmatprep.subr.mxu0 0.0
        %1145 = vmatpush1.msra.mxu0 0.0
        %1146 = vmatprep.subr.mxu0 0.0
        %1147 = vmatpush1.msra.mxu0 0.0
        %1148 = vmatprep.subr.mxu0 0.0
        %1149 = vmatpush1.msra.mxu0 0.0
        %1150 = vmatprep.subr.mxu0 0.0
        %1151 = vmatpush1.msra.mxu0 0.0
        %1152 = vmatprep.mubr.f32.mxu0 0.0
        %1153 = vmatmul.mubr.f32.gmra.mrb[0].mxu0 %v1086
        %v1154 = vpop.f32.mrb[0].mxu0
        %v1155 = vadd.f32 0.0, %v1154
        %v1156 = vpop.f32.mrb[0].mxu0
        %1157 = vdwg.mxu0
        %v1158 = vadd.f32 %v1082, %v1155
        %v1159 = vxor.u32 %v1158, 2147483648
        %v1160 = vmul.f32 %v1159, 1.442695
        %v1161 = vpow.pop %v1160
        %v1162 = vadd.f32 %v1161, 1.0
        %v1163 = vrcp.pop %v1162
        %v1164 = vmul.f32 1.0, %v1163
        %v1165 = vtanh.pop %v1158
        %v1166 = vmul.f32 %v1164, %v1069
        %1168 = vrot.lane.b32.xlu0 %v1165, 64
        %v1169 = vpop.permute.xlu0 %1168
        %v1171 = vmul.f32 %v1164, %v1169
        %1173 = vrot.lane.b32.xlu0 %v1171, 32
        %v1174 = vpop.permute.xlu0 %1173
        %v1176 = vadd.f32 %v1166, %v1174
        %v1177 = vtanh.pop %v1176
        %1179 = vrot.lane.b32.xlu0 %v1177, 64
        %v1180 = vpop.permute.xlu0 %1179
        %v1182 = vmul.f32 %v1164, %v1180
        %p1183 = scmp.eq.s32.totalorder %s1076, 1
        %s1184 = scalar_select %p1183, 1, 0
        %v1185 = vstv %s1184
        %vm1186 = vcmp.eq.s32.totalorder %v1185, 1
        %v1187 = vsel %vm1186, %v1182, %v1081
        %v1188 = vld [vmem:[#allocation2 + $0x2] sm:$0x1]
        %1190 = vrot.lane.b32.xlu0 %v1182, 32
        %v1191 = vpop.permute.xlu0 %1190
        %v1192 = vsel %vm977, %v1191, 0
        %1194 = vmatprep.subr.mxu0 0.0
        %1195 = vmatpush1.msra.mxu0 %v973
        %1196 = vmatprep.subr.mxu0 0.0
        %1197 = vmatpush1.msra.mxu0 %v974
        %1198 = vmatprep.subr.mxu0 0.0
        %1199 = vmatpush1.msra.mxu0 %v975
        %1200 = vmatprep.subr.mxu0 0.0
        %1201 = vmatpush1.msra.mxu0 %v976
        %1202 = vmatprep.subr.mxu0 0.0
        %1203 = vmatpush1.msra.mxu0 0.0
        %1204 = vmatprep.subr.mxu0 0.0
        %1205 = vmatpush1.msra.mxu0 0.0
        %1206 = vmatprep.subr.mxu0 0.0
        %1207 = vmatpush1.msra.mxu0 0.0
        %1208 = vmatprep.subr.mxu0 0.0
        %1209 = vmatpush1.msra.mxu0 0.0
        %1210 = vmatprep.subr.mxu0 0.0
        %1211 = vmatpush1.msra.mxu0 0.0
        %1212 = vmatprep.subr.mxu0 0.0
        %1213 = vmatpush1.msra.mxu0 0.0
        %1214 = vmatprep.subr.mxu0 0.0
        %1215 = vmatpush1.msra.mxu0 0.0
        %1216 = vmatprep.subr.mxu0 0.0
        %1217 = vmatpush1.msra.mxu0 0.0
        %1218 = vmatprep.subr.mxu0 0.0
        %1219 = vmatpush1.msra.mxu0 0.0
        %1220 = vmatprep.subr.mxu0 0.0
        %1221 = vmatpush1.msra.mxu0 0.0
        %1222 = vmatprep.subr.mxu0 0.0
        %1223 = vmatpush1.msra.mxu0 0.0
        %1224 = vmatprep.subr.mxu0 0.0
        %1225 = vmatpush1.msra.mxu0 0.0
        %1226 = vmatprep.subr.mxu0 0.0
        %1227 = vmatpush1.msra.mxu0 0.0
        %1228 = vmatprep.subr.mxu0 0.0
        %1229 = vmatpush1.msra.mxu0 0.0
        %1230 = vmatprep.subr.mxu0 0.0
        %1231 = vmatpush1.msra.mxu0 0.0
        %1232 = vmatprep.subr.mxu0 0.0
        %1233 = vmatpush1.msra.mxu0 0.0
        %1234 = vmatprep.subr.mxu0 0.0
        %1235 = vmatpush1.msra.mxu0 0.0
        %1236 = vmatprep.subr.mxu0 0.0
        %1237 = vmatpush1.msra.mxu0 0.0
        %1238 = vmatprep.subr.mxu0 0.0
        %1239 = vmatpush1.msra.mxu0 0.0
        %1240 = vmatprep.subr.mxu0 0.0
        %1241 = vmatpush1.msra.mxu0 0.0
        %1242 = vmatprep.subr.mxu0 0.0
        %1243 = vmatpush1.msra.mxu0 0.0
        %1244 = vmatprep.subr.mxu0 0.0
        %1245 = vmatpush1.msra.mxu0 0.0
        %1246 = vmatprep.subr.mxu0 0.0
        %1247 = vmatpush1.msra.mxu0 0.0
        %1248 = vmatprep.subr.mxu0 0.0
        %1249 = vmatpush1.msra.mxu0 0.0
        %1250 = vmatprep.subr.mxu0 0.0
        %1251 = vmatpush1.msra.mxu0 0.0
        %1252 = vmatprep.subr.mxu0 0.0
        %1253 = vmatpush1.msra.mxu0 0.0
        %1254 = vmatprep.subr.mxu0 0.0
        %1255 = vmatpush1.msra.mxu0 0.0
        %1256 = vmatprep.subr.mxu0 0.0
        %1257 = vmatpush1.msra.mxu0 0.0
        %1258 = vmatprep.mubr.f32.mxu0 0.0
        %1259 = vmatmul.mubr.f32.gmra.mrb[0].mxu0 %v1192
        %v1260 = vpop.f32.mrb[0].mxu0
        %v1261 = vadd.f32 0.0, %v1260
        %v1262 = vpop.f32.mrb[0].mxu0
        %1263 = vdwg.mxu0
        %v1264 = vadd.f32 %v1188, %v1261
        %v1265 = vxor.u32 %v1264, 2147483648
        %v1266 = vmul.f32 %v1265, 1.442695
        %v1267 = vpow.pop %v1266
        %v1268 = vadd.f32 %v1267, 1.0
        %v1269 = vrcp.pop %v1268
        %v1270 = vmul.f32 1.0, %v1269
        %v1271 = vtanh.pop %v1264
        %v1272 = vmul.f32 %v1270, %v1176
        %1274 = vrot.lane.b32.xlu0 %v1271, 64
        %v1275 = vpop.permute.xlu0 %1274
        %v1277 = vmul.f32 %v1270, %v1275
        %1279 = vrot.lane.b32.xlu0 %v1277, 32
        %v1280 = vpop.permute.xlu0 %1279
        %v1282 = vadd.f32 %v1272, %v1280
        %v1283 = vtanh.pop %v1282
        %1285 = vrot.lane.b32.xlu0 %v1283, 64
        %v1286 = vpop.permute.xlu0 %1285
        %v1288 = vmul.f32 %v1270, %v1286
        %p1289 = scmp.eq.s32.totalorder %s1076, 2
        %s1290 = scalar_select %p1289, 1, 0
        %v1291 = vstv %s1290
        %vm1292 = vcmp.eq.s32.totalorder %v1291, 1
        %v1293 = vsel %vm1292, %v1288, %v1187
        %v1294 = vld [vmem:[#allocation2 + $0x3] sm:$0x1]
        %1296 = vrot.lane.b32.xlu0 %v1288, 32
        %v1297 = vpop.permute.xlu0 %1296
        %v1298 = vsel %vm977, %v1297, 0
        %1300 = vmatprep.subr.mxu0 0.0
        %1301 = vmatpush1.msra.mxu0 %v973
        %1302 = vmatprep.subr.mxu0 0.0
        %1303 = vmatpush1.msra.mxu0 %v974
        %1304 = vmatprep.subr.mxu0 0.0
        %1305 = vmatpush1.msra.mxu0 %v975
        %1306 = vmatprep.subr.mxu0 0.0
        %1307 = vmatpush1.msra.mxu0 %v976
        %1308 = vmatprep.subr.mxu0 0.0
        %1309 = vmatpush1.msra.mxu0 0.0
        %1310 = vmatprep.subr.mxu0 0.0
        %1311 = vmatpush1.msra.mxu0 0.0
        %1312 = vmatprep.subr.mxu0 0.0
        %1313 = vmatpush1.msra.mxu0 0.0
        %1314 = vmatprep.subr.mxu0 0.0
        %1315 = vmatpush1.msra.mxu0 0.0
        %1316 = vmatprep.subr.mxu0 0.0
        %1317 = vmatpush1.msra.mxu0 0.0
        %1318 = vmatprep.subr.mxu0 0.0
        %1319 = vmatpush1.msra.mxu0 0.0
        %1320 = vmatprep.subr.mxu0 0.0
        %1321 = vmatpush1.msra.mxu0 0.0
        %1322 = vmatprep.subr.mxu0 0.0
        %1323 = vmatpush1.msra.mxu0 0.0
        %1324 = vmatprep.subr.mxu0 0.0
        %1325 = vmatpush1.msra.mxu0 0.0
        %1326 = vmatprep.subr.mxu0 0.0
        %1327 = vmatpush1.msra.mxu0 0.0
        %1328 = vmatprep.subr.mxu0 0.0
        %1329 = vmatpush1.msra.mxu0 0.0
        %1330 = vmatprep.subr.mxu0 0.0
        %1331 = vmatpush1.msra.mxu0 0.0
        %1332 = vmatprep.subr.mxu0 0.0
        %1333 = vmatpush1.msra.mxu0 0.0
        %1334 = vmatprep.subr.mxu0 0.0
        %1335 = vmatpush1.msra.mxu0 0.0
        %1336 = vmatprep.subr.mxu0 0.0
        %1337 = vmatpush1.msra.mxu0 0.0
        %1338 = vmatprep.subr.mxu0 0.0
        %1339 = vmatpush1.msra.mxu0 0.0
        %1340 = vmatprep.subr.mxu0 0.0
        %1341 = vmatpush1.msra.mxu0 0.0
        %1342 = vmatprep.subr.mxu0 0.0
        %1343 = vmatpush1.msra.mxu0 0.0
        %1344 = vmatprep.subr.mxu0 0.0
        %1345 = vmatpush1.msra.mxu0 0.0
        %1346 = vmatprep.subr.mxu0 0.0
        %1347 = vmatpush1.msra.mxu0 0.0
        %1348 = vmatprep.subr.mxu0 0.0
        %1349 = vmatpush1.msra.mxu0 0.0
        %1350 = vmatprep.subr.mxu0 0.0
        %1351 = vmatpush1.msra.mxu0 0.0
        %1352 = vmatprep.subr.mxu0 0.0
        %1353 = vmatpush1.msra.mxu0 0.0
        %1354 = vmatprep.subr.mxu0 0.0
        %1355 = vmatpush1.msra.mxu0 0.0
        %1356 = vmatprep.subr.mxu0 0.0
        %1357 = vmatpush1.msra.mxu0 0.0
        %1358 = vmatprep.subr.mxu0 0.0
        %1359 = vmatpush1.msra.mxu0 0.0
        %1360 = vmatprep.subr.mxu0 0.0
        %1361 = vmatpush1.msra.mxu0 0.0
        %1362 = vmatprep.subr.mxu0 0.0
        %1363 = vmatpush1.msra.mxu0 0.0
        %1364 = vmatprep.mubr.f32.mxu0 0.0
        %1365 = vmatmul.mubr.f32.gmra.mrb[0].mxu0 %v1298
        %v1366 = vpop.f32.mrb[0].mxu0
        %v1367 = vadd.f32 0.0, %v1366
        %v1368 = vpop.f32.mrb[0].mxu0
        %1369 = vdwg.mxu0
        %v1370 = vadd.f32 %v1294, %v1367
        %v1371 = vxor.u32 %v1370, 2147483648
        %v1372 = vmul.f32 %v1371, 1.442695
        %v1373 = vpow.pop %v1372
        %v1374 = vadd.f32 %v1373, 1.0
        %v1375 = vrcp.pop %v1374
        %v1376 = vmul.f32 1.0, %v1375
        %v1377 = vtanh.pop %v1370
        %v1378 = vmul.f32 %v1376, %v1282
        %1380 = vrot.lane.b32.xlu0 %v1377, 64
        %v1381 = vpop.permute.xlu0 %1380
        %v1383 = vmul.f32 %v1376, %v1381
        %1385 = vrot.lane.b32.xlu0 %v1383, 32
        %v1386 = vpop.permute.xlu0 %1385
        %v1388 = vadd.f32 %v1378, %v1386
        %v1389 = vtanh.pop %v1388
        %1391 = vrot.lane.b32.xlu0 %v1389, 64
        %v1392 = vpop.permute.xlu0 %1391
        %v1394 = vmul.f32 %v1376, %v1392
        %p1395 = scmp.eq.s32.totalorder %s1076, 3
        %s1396 = scalar_select %p1395, 1, 0
        %v1397 = vstv %s1396
        %vm1398 = vcmp.eq.s32.totalorder %v1397, 1
        %v1399 = vsel %vm1398, %v1394, %v1293
        %v1400 = vld [vmem:[#allocation2 + $0x4] sm:$0x1]
        %1402 = vrot.lane.b32.xlu0 %v1394, 32
        %v1403 = vpop.permute.xlu0 %1402
        %v1404 = vsel %vm977, %v1403, 0
        %1406 = vmatprep.subr.mxu0 0.0
        %1407 = vmatpush1.msra.mxu0 %v973
        %1408 = vmatprep.subr.mxu0 0.0
        %1409 = vmatpush1.msra.mxu0 %v974
        %1410 = vmatprep.subr.mxu0 0.0
        %1411 = vmatpush1.msra.mxu0 %v975
        %1412 = vmatprep.subr.mxu0 0.0
        %1413 = vmatpush1.msra.mxu0 %v976
        %1414 = vmatprep.subr.mxu0 0.0
        %1415 = vmatpush1.msra.mxu0 0.0
        %1416 = vmatprep.subr.mxu0 0.0
        %1417 = vmatpush1.msra.mxu0 0.0
        %1418 = vmatprep.subr.mxu0 0.0
        %1419 = vmatpush1.msra.mxu0 0.0
        %1420 = vmatprep.subr.mxu0 0.0
        %1421 = vmatpush1.msra.mxu0 0.0
        %1422 = vmatprep.subr.mxu0 0.0
        %1423 = vmatpush1.msra.mxu0 0.0
        %1424 = vmatprep.subr.mxu0 0.0
        %1425 = vmatpush1.msra.mxu0 0.0
        %1426 = vmatprep.subr.mxu0 0.0
        %1427 = vmatpush1.msra.mxu0 0.0
        %1428 = vmatprep.subr.mxu0 0.0
        %1429 = vmatpush1.msra.mxu0 0.0
        %1430 = vmatprep.subr.mxu0 0.0
        %1431 = vmatpush1.msra.mxu0 0.0
        %1432 = vmatprep.subr.mxu0 0.0
        %1433 = vmatpush1.msra.mxu0 0.0
        %1434 = vmatprep.subr.mxu0 0.0
        %1435 = vmatpush1.msra.mxu0 0.0
        %1436 = vmatprep.subr.mxu0 0.0
        %1437 = vmatpush1.msra.mxu0 0.0
        %1438 = vmatprep.subr.mxu0 0.0
        %1439 = vmatpush1.msra.mxu0 0.0
        %1440 = vmatprep.subr.mxu0 0.0
        %1441 = vmatpush1.msra.mxu0 0.0
        %1442 = vmatprep.subr.mxu0 0.0
        %1443 = vmatpush1.msra.mxu0 0.0
        %1444 = vmatprep.subr.mxu0 0.0
        %1445 = vmatpush1.msra.mxu0 0.0
        %1446 = vmatprep.subr.mxu0 0.0
        %1447 = vmatpush1.msra.mxu0 0.0
        %1448 = vmatprep.subr.mxu0 0.0
        %1449 = vmatpush1.msra.mxu0 0.0
        %1450 = vmatprep.subr.mxu0 0.0
        %1451 = vmatpush1.msra.mxu0 0.0
        %1452 = vmatprep.subr.mxu0 0.0
        %1453 = vmatpush1.msra.mxu0 0.0
        %1454 = vmatprep.subr.mxu0 0.0
        %1455 = vmatpush1.msra.mxu0 0.0
        %1456 = vmatprep.subr.mxu0 0.0
        %1457 = vmatpush1.msra.mxu0 0.0
        %1458 = vmatprep.subr.mxu0 0.0
        %1459 = vmatpush1.msra.mxu0 0.0
        %1460 = vmatprep.subr.mxu0 0.0
        %1461 = vmatpush1.msra.mxu0 0.0
        %1462 = vmatprep.subr.mxu0 0.0
        %1463 = vmatpush1.msra.mxu0 0.0
        %1464 = vmatprep.subr.mxu0 0.0
        %1465 = vmatpush1.msra.mxu0 0.0
        %1466 = vmatprep.subr.mxu0 0.0
        %1467 = vmatpush1.msra.mxu0 0.0
        %1468 = vmatprep.subr.mxu0 0.0
        %1469 = vmatpush1.msra.mxu0 0.0
        %1470 = vmatprep.mubr.f32.mxu0 0.0
        %1471 = vmatmul.mubr.f32.gmra.mrb[0].mxu0 %v1404
        %v1472 = vpop.f32.mrb[0].mxu0
        %v1473 = vadd.f32 0.0, %v1472
        %v1474 = vpop.f32.mrb[0].mxu0
        %1475 = vdwg.mxu0
        %v1476 = vadd.f32 %v1400, %v1473
        %v1477 = vxor.u32 %v1476, 2147483648
        %v1478 = vmul.f32 %v1477, 1.442695
        %v1479 = vpow.pop %v1478
        %v1480 = vadd.f32 %v1479, 1.0
        %v1481 = vrcp.pop %v1480
        %v1482 = vmul.f32 1.0, %v1481
        %v1483 = vtanh.pop %v1476
        %v1484 = vmul.f32 %v1482, %v1388
        %1486 = vrot.lane.b32.xlu0 %v1483, 64
        %v1487 = vpop.permute.xlu0 %1486
        %v1489 = vmul.f32 %v1482, %v1487
        %1491 = vrot.lane.b32.xlu0 %v1489, 32
        %v1492 = vpop.permute.xlu0 %1491
        %v1494 = vadd.f32 %v1484, %v1492
        %v1495 = vtanh.pop %v1494
        %1497 = vrot.lane.b32.xlu0 %v1495, 64
        %v1498 = vpop.permute.xlu0 %1497
        %v1500 = vmul.f32 %v1482, %v1498
        %p1501 = scmp.eq.s32.totalorder %s1076, 4
        %s1502 = scalar_select %p1501, 1, 0
        %v1503 = vstv %s1502
        %vm1504 = vcmp.eq.s32.totalorder %v1503, 1
        %v1505 = vsel %vm1504, %v1500, %v1399
        %v1506 = vld [vmem:[#allocation2 + $0x5] sm:$0x1]
        %1508 = vrot.lane.b32.xlu0 %v1500, 32
        %v1509 = vpop.permute.xlu0 %1508
        %v1510 = vsel %vm977, %v1509, 0
        %1512 = vmatprep.subr.mxu0 0.0
        %1513 = vmatpush1.msra.mxu0 %v973
        %1514 = vmatprep.subr.mxu0 0.0
        %1515 = vmatpush1.msra.mxu0 %v974
        %1516 = vmatprep.subr.mxu0 0.0
        %1517 = vmatpush1.msra.mxu0 %v975
        %1518 = vmatprep.subr.mxu0 0.0
        %1519 = vmatpush1.msra.mxu0 %v976
        %1520 = vmatprep.subr.mxu0 0.0
        %1521 = vmatpush1.msra.mxu0 0.0
        %1522 = vmatprep.subr.mxu0 0.0
        %1523 = vmatpush1.msra.mxu0 0.0
        %1524 = vmatprep.subr.mxu0 0.0
        %1525 = vmatpush1.msra.mxu0 0.0
        %1526 = vmatprep.subr.mxu0 0.0
        %1527 = vmatpush1.msra.mxu0 0.0
        %1528 = vmatprep.subr.mxu0 0.0
        %1529 = vmatpush1.msra.mxu0 0.0
        %1530 = vmatprep.subr.mxu0 0.0
        %1531 = vmatpush1.msra.mxu0 0.0
        %1532 = vmatprep.subr.mxu0 0.0
        %1533 = vmatpush1.msra.mxu0 0.0
        %1534 = vmatprep.subr.mxu0 0.0
        %1535 = vmatpush1.msra.mxu0 0.0
        %1536 = vmatprep.subr.mxu0 0.0
        %1537 = vmatpush1.msra.mxu0 0.0
        %1538 = vmatprep.subr.mxu0 0.0
        %1539 = vmatpush1.msra.mxu0 0.0
        %1540 = vmatprep.subr.mxu0 0.0
        %1541 = vmatpush1.msra.mxu0 0.0
        %1542 = vmatprep.subr.mxu0 0.0
        %1543 = vmatpush1.msra.mxu0 0.0
        %1544 = vmatprep.subr.mxu0 0.0
        %1545 = vmatpush1.msra.mxu0 0.0
        %1546 = vmatprep.subr.mxu0 0.0
        %1547 = vmatpush1.msra.mxu0 0.0
        %1548 = vmatprep.subr.mxu0 0.0
        %1549 = vmatpush1.msra.mxu0 0.0
        %1550 = vmatprep.subr.mxu0 0.0
        %1551 = vmatpush1.msra.mxu0 0.0
        %1552 = vmatprep.subr.mxu0 0.0
        %1553 = vmatpush1.msra.mxu0 0.0
        %1554 = vmatprep.subr.mxu0 0.0
        %1555 = vmatpush1.msra.mxu0 0.0
        %1556 = vmatprep.subr.mxu0 0.0
        %1557 = vmatpush1.msra.mxu0 0.0
        %1558 = vmatprep.subr.mxu0 0.0
        %1559 = vmatpush1.msra.mxu0 0.0
        %1560 = vmatprep.subr.mxu0 0.0
        %1561 = vmatpush1.msra.mxu0 0.0
        %1562 = vmatprep.subr.mxu0 0.0
        %1563 = vmatpush1.msra.mxu0 0.0
        %1564 = vmatprep.subr.mxu0 0.0
        %1565 = vmatpush1.msra.mxu0 0.0
        %1566 = vmatprep.subr.mxu0 0.0
        %1567 = vmatpush1.msra.mxu0 0.0
        %1568 = vmatprep.subr.mxu0 0.0
        %1569 = vmatpush1.msra.mxu0 0.0
        %1570 = vmatprep.subr.mxu0 0.0
        %1571 = vmatpush1.msra.mxu0 0.0
        %1572 = vmatprep.subr.mxu0 0.0
        %1573 = vmatpush1.msra.mxu0 0.0
        %1574 = vmatprep.subr.mxu0 0.0
        %1575 = vmatpush1.msra.mxu0 0.0
        %1576 = vmatprep.mubr.f32.mxu0 0.0
        %1577 = vmatmul.mubr.f32.gmra.mrb[0].mxu0 %v1510
        %v1578 = vpop.f32.mrb[0].mxu0
        %v1579 = vadd.f32 0.0, %v1578
        %v1580 = vpop.f32.mrb[0].mxu0
        %1581 = vdwg.mxu0
        %v1582 = vadd.f32 %v1506, %v1579
        %v1583 = vxor.u32 %v1582, 2147483648
        %v1584 = vmul.f32 %v1583, 1.442695
        %v1585 = vpow.pop %v1584
        %v1586 = vadd.f32 %v1585, 1.0
        %v1587 = vrcp.pop %v1586
        %v1588 = vmul.f32 1.0, %v1587
        %v1589 = vtanh.pop %v1582
        %v1590 = vmul.f32 %v1588, %v1494
        %1592 = vrot.lane.b32.xlu0 %v1589, 64
        %v1593 = vpop.permute.xlu0 %1592
        %v1595 = vmul.f32 %v1588, %v1593
        %1597 = vrot.lane.b32.xlu0 %v1595, 32
        %v1598 = vpop.permute.xlu0 %1597
        %v1600 = vadd.f32 %v1590, %v1598
        %v1601 = vtanh.pop %v1600
        %1603 = vrot.lane.b32.xlu0 %v1601, 64
        %v1604 = vpop.permute.xlu0 %1603
        %v1606 = vmul.f32 %v1588, %v1604
        %p1607 = scmp.eq.s32.totalorder %s1076, 5
        %s1608 = scalar_select %p1607, 1, 0
        %v1609 = vstv %s1608
        %vm1610 = vcmp.eq.s32.totalorder %v1609, 1
        %v1611 = vsel %vm1610, %v1606, %v1505
        %v1612 = vld [vmem:[#allocation2 + $0x6] sm:$0x1]
        %1614 = vrot.lane.b32.xlu0 %v1606, 32
        %v1615 = vpop.permute.xlu0 %1614
        %v1616 = vsel %vm977, %v1615, 0
        %1618 = vmatprep.subr.mxu0 0.0
        %1619 = vmatpush1.msra.mxu0 %v973
        %1620 = vmatprep.subr.mxu0 0.0
        %1621 = vmatpush1.msra.mxu0 %v974
        %1622 = vmatprep.subr.mxu0 0.0
        %1623 = vmatpush1.msra.mxu0 %v975
        %1624 = vmatprep.subr.mxu0 0.0
        %1625 = vmatpush1.msra.mxu0 %v976
        %1626 = vmatprep.subr.mxu0 0.0
        %1627 = vmatpush1.msra.mxu0 0.0
        %1628 = vmatprep.subr.mxu0 0.0
        %1629 = vmatpush1.msra.mxu0 0.0
        %1630 = vmatprep.subr.mxu0 0.0
        %1631 = vmatpush1.msra.mxu0 0.0
        %1632 = vmatprep.subr.mxu0 0.0
        %1633 = vmatpush1.msra.mxu0 0.0
        %1634 = vmatprep.subr.mxu0 0.0
        %1635 = vmatpush1.msra.mxu0 0.0
        %1636 = vmatprep.subr.mxu0 0.0
        %1637 = vmatpush1.msra.mxu0 0.0
        %1638 = vmatprep.subr.mxu0 0.0
        %1639 = vmatpush1.msra.mxu0 0.0
        %1640 = vmatprep.subr.mxu0 0.0
        %1641 = vmatpush1.msra.mxu0 0.0
        %1642 = vmatprep.subr.mxu0 0.0
        %1643 = vmatpush1.msra.mxu0 0.0
        %1644 = vmatprep.subr.mxu0 0.0
        %1645 = vmatpush1.msra.mxu0 0.0
        %1646 = vmatprep.subr.mxu0 0.0
        %1647 = vmatpush1.msra.mxu0 0.0
        %1648 = vmatprep.subr.mxu0 0.0
        %1649 = vmatpush1.msra.mxu0 0.0
        %1650 = vmatprep.subr.mxu0 0.0
        %1651 = vmatpush1.msra.mxu0 0.0
        %1652 = vmatprep.subr.mxu0 0.0
        %1653 = vmatpush1.msra.mxu0 0.0
        %1654 = vmatprep.subr.mxu0 0.0
        %1655 = vmatpush1.msra.mxu0 0.0
        %1656 = vmatprep.subr.mxu0 0.0
        %1657 = vmatpush1.msra.mxu0 0.0
        %1658 = vmatprep.subr.mxu0 0.0
        %1659 = vmatpush1.msra.mxu0 0.0
        %1660 = vmatprep.subr.mxu0 0.0
        %1661 = vmatpush1.msra.mxu0 0.0
        %1662 = vmatprep.subr.mxu0 0.0
        %1663 = vmatpush1.msra.mxu0 0.0
        %1664 = vmatprep.subr.mxu0 0.0
        %1665 = vmatpush1.msra.mxu0 0.0
        %1666 = vmatprep.subr.mxu0 0.0
        %1667 = vmatpush1.msra.mxu0 0.0
        %1668 = vmatprep.subr.mxu0 0.0
        %1669 = vmatpush1.msra.mxu0 0.0
        %1670 = vmatprep.subr.mxu0 0.0
        %1671 = vmatpush1.msra.mxu0 0.0
        %1672 = vmatprep.subr.mxu0 0.0
        %1673 = vmatpush1.msra.mxu0 0.0
        %1674 = vmatprep.subr.mxu0 0.0
        %1675 = vmatpush1.msra.mxu0 0.0
        %1676 = vmatprep.subr.mxu0 0.0
        %1677 = vmatpush1.msra.mxu0 0.0
        %1678 = vmatprep.subr.mxu0 0.0
        %1679 = vmatpush1.msra.mxu0 0.0
        %1680 = vmatprep.subr.mxu0 0.0
        %1681 = vmatpush1.msra.mxu0 0.0
        %1682 = vmatprep.mubr.f32.mxu0 0.0
        %1683 = vmatmul.mubr.f32.gmra.mrb[0].mxu0 %v1616
        %v1684 = vpop.f32.mrb[0].mxu0
        %v1685 = vadd.f32 0.0, %v1684
        %v1686 = vpop.f32.mrb[0].mxu0
        %1687 = vdwg.mxu0
        %v1688 = vadd.f32 %v1612, %v1685
        %v1689 = vxor.u32 %v1688, 2147483648
        %v1690 = vmul.f32 %v1689, 1.442695
        %v1691 = vpow.pop %v1690
        %v1692 = vadd.f32 %v1691, 1.0
        %v1693 = vrcp.pop %v1692
        %v1694 = vmul.f32 1.0, %v1693
        %v1695 = vtanh.pop %v1688
        %v1696 = vmul.f32 %v1694, %v1600
        %1698 = vrot.lane.b32.xlu0 %v1695, 64
        %v1699 = vpop.permute.xlu0 %1698
        %v1701 = vmul.f32 %v1694, %v1699
        %1703 = vrot.lane.b32.xlu0 %v1701, 32
        %v1704 = vpop.permute.xlu0 %1703
        %v1706 = vadd.f32 %v1696, %v1704
        %v1707 = vtanh.pop %v1706
        %1709 = vrot.lane.b32.xlu0 %v1707, 64
        %v1710 = vpop.permute.xlu0 %1709
        %v1712 = vmul.f32 %v1694, %v1710
        %p1713 = scmp.eq.s32.totalorder %s1076, 6
        %s1714 = scalar_select %p1713, 1, 0
        %v1715 = vstv %s1714
        %vm1716 = vcmp.eq.s32.totalorder %v1715, 1
        %v1717 = vsel %vm1716, %v1712, %v1611
        %v1718 = vld [vmem:[#allocation2 + $0x7] sm:$0x1]
        %1720 = vrot.lane.b32.xlu0 %v1712, 32
        %v1721 = vpop.permute.xlu0 %1720
        %v1722 = vsel %vm977, %v1721, 0
        %1724 = vmatprep.subr.mxu0 0.0
        %1725 = vmatpush1.msra.mxu0 %v973
        %1726 = vmatprep.subr.mxu0 0.0
        %1727 = vmatpush1.msra.mxu0 %v974
        %1728 = vmatprep.subr.mxu0 0.0
        %1729 = vmatpush1.msra.mxu0 %v975
        %1730 = vmatprep.subr.mxu0 0.0
        %1731 = vmatpush1.msra.mxu0 %v976
        %1732 = vmatprep.subr.mxu0 0.0
        %1733 = vmatpush1.msra.mxu0 0.0
        %1734 = vmatprep.subr.mxu0 0.0
        %1735 = vmatpush1.msra.mxu0 0.0
        %1736 = vmatprep.subr.mxu0 0.0
        %1737 = vmatpush1.msra.mxu0 0.0
        %1738 = vmatprep.subr.mxu0 0.0
        %1739 = vmatpush1.msra.mxu0 0.0
        %1740 = vmatprep.subr.mxu0 0.0
        %1741 = vmatpush1.msra.mxu0 0.0
        %1742 = vmatprep.subr.mxu0 0.0
        %1743 = vmatpush1.msra.mxu0 0.0
        %1744 = vmatprep.subr.mxu0 0.0
        %1745 = vmatpush1.msra.mxu0 0.0
        %1746 = vmatprep.subr.mxu0 0.0
        %1747 = vmatpush1.msra.mxu0 0.0
        %1748 = vmatprep.subr.mxu0 0.0
        %1749 = vmatpush1.msra.mxu0 0.0
        %1750 = vmatprep.subr.mxu0 0.0
        %1751 = vmatpush1.msra.mxu0 0.0
        %1752 = vmatprep.subr.mxu0 0.0
        %1753 = vmatpush1.msra.mxu0 0.0
        %1754 = vmatprep.subr.mxu0 0.0
        %1755 = vmatpush1.msra.mxu0 0.0
        %1756 = vmatprep.subr.mxu0 0.0
        %1757 = vmatpush1.msra.mxu0 0.0
        %1758 = vmatprep.subr.mxu0 0.0
        %1759 = vmatpush1.msra.mxu0 0.0
        %1760 = vmatprep.subr.mxu0 0.0
        %1761 = vmatpush1.msra.mxu0 0.0
        %1762 = vmatprep.subr.mxu0 0.0
        %1763 = vmatpush1.msra.mxu0 0.0
        %1764 = vmatprep.subr.mxu0 0.0
        %1765 = vmatpush1.msra.mxu0 0.0
        %1766 = vmatprep.subr.mxu0 0.0
        %1767 = vmatpush1.msra.mxu0 0.0
        %1768 = vmatprep.subr.mxu0 0.0
        %1769 = vmatpush1.msra.mxu0 0.0
        %1770 = vmatprep.subr.mxu0 0.0
        %1771 = vmatpush1.msra.mxu0 0.0
        %1772 = vmatprep.subr.mxu0 0.0
        %1773 = vmatpush1.msra.mxu0 0.0
        %1774 = vmatprep.subr.mxu0 0.0
        %1775 = vmatpush1.msra.mxu0 0.0
        %1776 = vmatprep.subr.mxu0 0.0
        %1777 = vmatpush1.msra.mxu0 0.0
        %1778 = vmatprep.subr.mxu0 0.0
        %1779 = vmatpush1.msra.mxu0 0.0
        %1780 = vmatprep.subr.mxu0 0.0
        %1781 = vmatpush1.msra.mxu0 0.0
        %1782 = vmatprep.subr.mxu0 0.0
        %1783 = vmatpush1.msra.mxu0 0.0
        %1784 = vmatprep.subr.mxu0 0.0
        %1785 = vmatpush1.msra.mxu0 0.0
        %1786 = vmatprep.subr.mxu0 0.0
        %1787 = vmatpush1.msra.mxu0 0.0
        %1788 = vmatprep.mubr.f32.mxu0 0.0
        %1789 = vmatmul.mubr.f32.gmra.mrb[0].mxu0 %v1722
        %v1790 = vpop.f32.mrb[0].mxu0
        %v1791 = vadd.f32 0.0, %v1790
        %v1792 = vpop.f32.mrb[0].mxu0
        %1793 = vdwg.mxu0
        %v1794 = vadd.f32 %v1718, %v1791
        %v1795 = vxor.u32 %v1794, 2147483648
        %v1796 = vmul.f32 %v1795, 1.442695
        %v1797 = vpow.pop %v1796
        %v1798 = vadd.f32 %v1797, 1.0
        %v1799 = vrcp.pop %v1798
        %v1800 = vmul.f32 1.0, %v1799
        %v1801 = vtanh.pop %v1794
        %v1802 = vmul.f32 %v1800, %v1706
        %1804 = vrot.lane.b32.xlu0 %v1801, 64
        %v1805 = vpop.permute.xlu0 %1804
        %v1807 = vmul.f32 %v1800, %v1805
        %1809 = vrot.lane.b32.xlu0 %v1807, 32
        %v1810 = vpop.permute.xlu0 %1809
        %v1812 = vadd.f32 %v1802, %v1810
        %v1813 = vtanh.pop %v1812
        %1815 = vrot.lane.b32.xlu0 %v1813, 64
        %v1816 = vpop.permute.xlu0 %1815
        %v1818 = vmul.f32 %v1800, %v1816
        %p1819 = scmp.eq.s32.totalorder %s1076, 7
        %s1820 = scalar_select %p1819, 1, 0
        %v1821 = vstv %s1820
        %vm1822 = vcmp.eq.s32.totalorder %v1821, 1
        %v1823 = vsel %vm1822, %v1818, %v1717
        %v1824 = vld [vmem:[%s7] sm:$0xff]
        %v1825 = vld [vmem:[%s7 + $0x8] sm:$0xff]
        %v1826 = vld [vmem:[%s7 + $0x10] sm:$0xff]
        %v1827 = vld [vmem:[%s7 + $0x18] sm:$0xff]
        %v1828 = vld [vmem:[%s8] sm:$0x1]
        %1830 = vrot.lane.b32.xlu0 %v1823, 32
        %v1831 = vpop.permute.xlu0 %1830
        %v1832 = vsel %vm977, %v1831, 0
        %1834 = vmatprep.subr.mxu0 0.0
        %1835 = vmatpush1.msra.mxu0 %v1824
        %1836 = vmatprep.subr.mxu0 0.0
        %1837 = vmatpush1.msra.mxu0 %v1825
        %1838 = vmatprep.subr.mxu0 0.0
        %1839 = vmatpush1.msra.mxu0 %v1826
        %1840 = vmatprep.subr.mxu0 0.0
        %1841 = vmatpush1.msra.mxu0 %v1827
        %1842 = vmatprep.subr.mxu0 0.0
        %1843 = vmatpush1.msra.mxu0 0.0
        %1844 = vmatprep.subr.mxu0 0.0
        %1845 = vmatpush1.msra.mxu0 0.0
        %1846 = vmatprep.subr.mxu0 0.0
        %1847 = vmatpush1.msra.mxu0 0.0
        %1848 = vmatprep.subr.mxu0 0.0
        %1849 = vmatpush1.msra.mxu0 0.0
        %1850 = vmatprep.subr.mxu0 0.0
        %1851 = vmatpush1.msra.mxu0 0.0
        %1852 = vmatprep.subr.mxu0 0.0
        %1853 = vmatpush1.msra.mxu0 0.0
        %1854 = vmatprep.subr.mxu0 0.0
        %1855 = vmatpush1.msra.mxu0 0.0
        %1856 = vmatprep.subr.mxu0 0.0
        %1857 = vmatpush1.msra.mxu0 0.0
        %1858 = vmatprep.subr.mxu0 0.0
        %1859 = vmatpush1.msra.mxu0 0.0
        %1860 = vmatprep.subr.mxu0 0.0
        %1861 = vmatpush1.msra.mxu0 0.0
        %1862 = vmatprep.subr.mxu0 0.0
        %1863 = vmatpush1.msra.mxu0 0.0
        %1864 = vmatprep.subr.mxu0 0.0
        %1865 = vmatpush1.msra.mxu0 0.0
        %1866 = vmatprep.subr.mxu0 0.0
        %1867 = vmatpush1.msra.mxu0 0.0
        %1868 = vmatprep.subr.mxu0 0.0
        %1869 = vmatpush1.msra.mxu0 0.0
        %1870 = vmatprep.subr.mxu0 0.0
        %1871 = vmatpush1.msra.mxu0 0.0
        %1872 = vmatprep.subr.mxu0 0.0
        %1873 = vmatpush1.msra.mxu0 0.0
        %1874 = vmatprep.subr.mxu0 0.0
        %1875 = vmatpush1.msra.mxu0 0.0
        %1876 = vmatprep.subr.mxu0 0.0
        %1877 = vmatpush1.msra.mxu0 0.0
        %1878 = vmatprep.subr.mxu0 0.0
        %1879 = vmatpush1.msra.mxu0 0.0
        %1880 = vmatprep.subr.mxu0 0.0
        %1881 = vmatpush1.msra.mxu0 0.0
        %1882 = vmatprep.subr.mxu0 0.0
        %1883 = vmatpush1.msra.mxu0 0.0
        %1884 = vmatprep.subr.mxu0 0.0
        %1885 = vmatpush1.msra.mxu0 0.0
        %1886 = vmatprep.subr.mxu0 0.0
        %1887 = vmatpush1.msra.mxu0 0.0
        %1888 = vmatprep.subr.mxu0 0.0
        %1889 = vmatpush1.msra.mxu0 0.0
        %1890 = vmatprep.subr.mxu0 0.0
        %1891 = vmatpush1.msra.mxu0 0.0
        %1892 = vmatprep.subr.mxu0 0.0
        %1893 = vmatpush1.msra.mxu0 0.0
        %1894 = vmatprep.subr.mxu0 0.0
        %1895 = vmatpush1.msra.mxu0 0.0
        %1896 = vmatprep.subr.mxu0 0.0
        %1897 = vmatpush1.msra.mxu0 0.0
        %1898 = vmatprep.mubr.f32.mxu0 0.0
        %1899 = vmatmul.mubr.f32.gmra.mrb[0].mxu0 %v1832
        %v1900 = vpop.f32.mrb[0].mxu0
        %v1901 = vadd.f32 %v1828, %v1900
        %v1902 = vpop.f32.mrb[0].mxu0
        %1903 = vdwg.mxu0
        %v1904 = vtanh.pop %v1901
        %v1905 = vld [vmem:[%s9] sm:$0xff]
        %v1906 = vld [vmem:[%s9 + $0x8] sm:$0xff]
        %v1907 = vld [vmem:[%s9 + $0x10] sm:$0xff]
        %v1908 = vld [vmem:[%s9 + $0x18] sm:$0xff]
        %v1909 = vld [vmem:[%s9 + $0x20] sm:$0xff]
        %v1910 = vld [vmem:[%s9 + $0x28] sm:$0xff]
        %v1911 = vld [vmem:[%s9 + $0x30] sm:$0xff]
        %v1912 = vld [vmem:[%s9 + $0x38] sm:$0xff]
        %v1913 = vld [vmem:[#allocation5] sm:$0x1]
        %vm1914 = vcmask 523264
        %v1916 = vsel %vm1914, %v1904, 0
        %1918 = vmatprep.subr.mxu0 0.0
        %1919 = vmatpush1.msra.mxu0 %v1905
        %1920 = vmatprep.subr.mxu0 0.0
        %1921 = vmatpush1.msra.mxu0 %v1906
        %1922 = vmatprep.subr.mxu0 0.0
        %1923 = vmatpush1.msra.mxu0 %v1907
        %1924 = vmatprep.subr.mxu0 0.0
        %1925 = vmatpush1.msra.mxu0 %v1908
        %1926 = vmatprep.subr.mxu0 0.0
        %1927 = vmatpush1.msra.mxu0 %v1909
        %1928 = vmatprep.subr.mxu0 0.0
        %1929 = vmatpush1.msra.mxu0 %v1910
        %1930 = vmatprep.subr.mxu0 0.0
        %1931 = vmatpush1.msra.mxu0 %v1911
        %1932 = vmatprep.subr.mxu0 0.0
        %1933 = vmatpush1.msra.mxu0 %v1912
        %1934 = vmatprep.subr.mxu0 0.0
        %1935 = vmatpush1.msra.mxu0 0.0
        %1936 = vmatprep.subr.mxu0 0.0
        %1937 = vmatpush1.msra.mxu0 0.0
        %1938 = vmatprep.subr.mxu0 0.0
        %1939 = vmatpush1.msra.mxu0 0.0
        %1940 = vmatprep.subr.mxu0 0.0
        %1941 = vmatpush1.msra.mxu0 0.0
        %1942 = vmatprep.subr.mxu0 0.0
        %1943 = vmatpush1.msra.mxu0 0.0
        %1944 = vmatprep.subr.mxu0 0.0
        %1945 = vmatpush1.msra.mxu0 0.0
        %1946 = vmatprep.subr.mxu0 0.0
        %1947 = vmatpush1.msra.mxu0 0.0
        %1948 = vmatprep.subr.mxu0 0.0
        %1949 = vmatpush1.msra.mxu0 0.0
        %1950 = vmatprep.subr.mxu0 0.0
        %1951 = vmatpush1.msra.mxu0 0.0
        %1952 = vmatprep.subr.mxu0 0.0
        %1953 = vmatpush1.msra.mxu0 0.0
        %1954 = vmatprep.subr.mxu0 0.0
        %1955 = vmatpush1.msra.mxu0 0.0
        %1956 = vmatprep.subr.mxu0 0.0
        %1957 = vmatpush1.msra.mxu0 0.0
        %1958 = vmatprep.subr.mxu0 0.0
        %1959 = vmatpush1.msra.mxu0 0.0
        %1960 = vmatprep.subr.mxu0 0.0
        %1961 = vmatpush1.msra.mxu0 0.0
        %1962 = vmatprep.subr.mxu0 0.0
        %1963 = vmatpush1.msra.mxu0 0.0
        %1964 = vmatprep.subr.mxu0 0.0
        %1965 = vmatpush1.msra.mxu0 0.0
        %1966 = vmatprep.subr.mxu0 0.0
        %1967 = vmatpush1.msra.mxu0 0.0
        %1968 = vmatprep.subr.mxu0 0.0
        %1969 = vmatpush1.msra.mxu0 0.0
        %1970 = vmatprep.subr.mxu0 0.0
        %1971 = vmatpush1.msra.mxu0 0.0
        %1972 = vmatprep.subr.mxu0 0.0
        %1973 = vmatpush1.msra.mxu0 0.0
        %1974 = vmatprep.subr.mxu0 0.0
        %1975 = vmatpush1.msra.mxu0 0.0
        %1976 = vmatprep.subr.mxu0 0.0
        %1977 = vmatpush1.msra.mxu0 0.0
        %1978 = vmatprep.subr.mxu0 0.0
        %1979 = vmatpush1.msra.mxu0 0.0
        %1980 = vmatprep.subr.mxu0 0.0
        %1981 = vmatpush1.msra.mxu0 0.0
        %1982 = vmatprep.mubr.f32.mxu0 0.0
        %1983 = vmatmul.mubr.f32.gmra.mrb[0].mxu0 %v1916
        %v1984 = vpop.f32.mrb[0].mxu0
        %v1985 = vadd.f32 %v1913, %v1984
        %v1986 = vpop.f32.mrb[0].mxu0
        %1987 = vdwg.mxu0
        %vm1988 = vcmask 0
        %1989 = vst.msk [vmem:[%s447] sm:$0x1] %vm1988, %v1985
        %p1990 = scmp.lt.s32.totalorder %s32, 1
        %s1991 = scalar_select %p1990, %s32, 1
        %s1992 = scalar_lea.vmem %s11, %s1991
        // Predicated region
        $region92: #{image_lstm_forward.1} parent=78 // pred_check
          %p1993 = pneg %p265
        $region93: #{image_lstm_forward.1} parent=78 // pred_check_branch
          %1995 = sbr.rel (%p1993) target = $region95
        $region94: #{image_lstm_forward.1} parent=78 // pred_region
          _
        $region95: #{image_lstm_forward.1} parent=78 // pred_fallthru
          _
      $region79: #{image_lstm_forward.1} parent=5 // pred_fallthru
        _
      %p1996 = scmp.le.s32.totalorder 2, %s27
      // Predicated region
      $region96: #{image_lstm_forward.1} parent=5 // pred_check
        %p1997 = pneg %p1996
      $region97: #{image_lstm_forward.1} parent=5 // pred_check_branch
        %1999 = sbr.rel (%p1997) target = $region99
      $region98: #{image_lstm_forward.1} parent=5 // pred_region
        %s2000 = ssub.s32 %s27, 2
        // Predicated region
        $region100: #{image_lstm_forward.1} parent=98 // pred_check
          %p2001 = pneg %p271
        $region101: #{image_lstm_forward.1} parent=98 // pred_check_branch
          %2003 = sbr.rel (%p2001) target = $region103
        $region102: #{image_lstm_forward.1} parent=98 // pred_region
          %p2004 = scmp.lt.s32.totalorder %s33, 1
          %s2005 = scalar_select %p2004, %s33, 1
          %s2006 = scalar_lea.vmem %s11, %s2005
        $region103: #{image_lstm_forward.1} parent=98 // pred_fallthru
          _
      $region99: #{image_lstm_forward.1} parent=5 // pred_fallthru
        _
    $region6: #{image_lstm_forward.1} parent=1 // loop_footer
      %s31 = sadd.s32 1, %s27
    $region7: #{image_lstm_forward.1} parent=1 // loop_footer_branch
      %26 = sbr.rel target = $region3
    $region8: #{image_lstm_forward.1} parent=1 // loop_exit
      _
    %2007 = vsyncpa [#allocation8], 1
    %s2008 = scalar_lea.sflag [#allocation8], 1
    %2009 = vsyncpa %s2008, 1
    %2010 = vsyncpa [#allocation10], 1

</llo_original>
